<compile_context>
chip_gen: v7x
topology: tpu7x:2x2x1
jax: 0.10.0
libtpu: 0.0.40
codegen_flags: <defaults>
</compile_context>

<pallas_src>
import functools

import jax
import jax.numpy as jnp
from jax.experimental import pallas as pl
from jax.experimental.pallas import tpu as pltpu

# ---- small, shape-consistent hyperparams (real module uses n_embd=384, n_head=6) ----
N_EMBD = 48          # must be divisible by N_HEAD
N_HEAD = 6
HEAD_SIZE = N_EMBD // N_HEAD
BATCH = 2
SEQ = 8              # T <= block_size (mask built for actual T, as in the module)
LN_EPS = 1e-5
NEG_BIG = -1e30      # large finite negative; diagonal is always unmasked


def _layer_norm(v, w, b):
    mu = jnp.mean(v, axis=-1, keepdims=True)
    var = jnp.mean((v - mu) ** 2, axis=-1, keepdims=True)
    return (v - mu) * jax.lax.rsqrt(var + LN_EPS) * w + b


def _block_kernel(x_ref,         # (T, C) rows of this batch element
                  vec_ref,       # (8, 4C) packed ln1_w/ln1_b/ln2_w/ln2_b/bp/b1/b2
                  wqkv_ref,      # (C, 3C) fused q|k|v weight (1/sqrt(C) folded into q)
                  wp_ref,        # (C, C)  output projection weight
                  w1_ref,        # (C, 4C) FFN expand
                  w2_ref,        # (4C, C) FFN contract
                  o_ref,         # (T, C)  output rows
                  attn_ref,      # (T, C)  VMEM scratch: concatenated head outputs
                  *, n_head, head_size, matmul_dtype, approx_recip):
    T, C = x_ref.shape
    x = x_ref[...]                                    # (T, C) f32

    # unpack the fused bias/gain operand (one DMA for 7 vectors)
    ln1_w = vec_ref[0:1, :C]
    ln1_b = vec_ref[1:2, :C]
    ln2_w = vec_ref[2:3, :C]
    ln2_b = vec_ref[3:4, :C]
    bp    = vec_ref[4:5, :C]
    b1    = vec_ref[5:6, :]                           # (1, 4C)
    b2    = vec_ref[6:7, :C]

    def mm(a, b):
        # MXU matmul: operands in matmul_dtype (bf16 on v6e/v7x), f32 accumulation.
        return jnp.dot(a.astype(matmul_dtype), b.astype(matmul_dtype),
                       preferred_element_type=jnp.float32)

    # ---------------- LayerNorm 1 (f32 VPU math) ----------------
    h = _layer_norm(x, ln1_w, ln1_b)

    # ---------------- fused QKV projection: one wide matmul ----------------
    qkv = mm(h, wqkv_ref[...])                        # (T, 3C) f32

    # ---- additive causal bias, built once per grid step (per-batch (T,T)) ----
    rows = jax.lax.broadcasted_iota(jnp.int32, (T, T), 0)
    cols = jax.lax.broadcasted_iota(jnp.int32, (T, T), 1)
    bias = jnp.where(cols <= rows, 0.0, NEG_BIG).astype(jnp.float32)

    # ---------------- per-head attention ----------------
    for hd in range(n_head):
        lo = hd * head_size
        qh = qkv[:, lo:lo + head_size]                # (T, hs) static lane slices
        kh = qkv[:, C + lo:C + lo + head_size]
        vh = qkv[:, 2 * C + lo:2 * C + lo + head_size]

        # scores without materializing K^T: contract last dim of both operands
        s = jax.lax.dot_general(
            qh.astype(matmul_dtype), kh.astype(matmul_dtype),
            dimension_numbers=(((1,), (1,)), ((), ())),
            preferred_element_type=jnp.float32)       # (T, T)
        s = s + bias                                  # vadd instead of vselect
        s = s - jnp.max(s, axis=-1, keepdims=True)
        p = jnp.exp(s)
        denom = jnp.sum(p, axis=-1, keepdims=True)
        if approx_recip:
            p = p * pl.reciprocal(denom, approx=True)  # EUP slot
        else:
            p = p / denom

        # within-vreg concat: write head output at its lane offset
        attn_ref[:, lo:lo + head_size] = mm(p, vh)    # (T, hs)

    # ---------------- single wide output projection (K = C contraction) ----
    sa = mm(attn_ref[...], wp_ref[...]) + bp
    x1 = x + sa                                       # residual 1 (f32)

    # ---------------- LayerNorm 2 + FeedForward ----------------
    h2 = _layer_norm(x1, ln2_w, ln2_b)
    f1 = jnp.maximum(mm(h2, w1_ref[...]) + b1, 0.0)   # ReLU
    f2 = mm(f1, w2_ref[...]) + b2

    o_ref[...] = x1 + f2                              # residual 2


def block_forward(x, params, *, matmul_dtype=jnp.float32, approx_recip=True):
    """x: (B, T, C) float32. params: dict of weights. Returns (B, T, C)."""
    B, T, C = x.shape
    assert C == N_EMBD
    H, hs = N_HEAD, HEAD_SIZE
    Hid = 4 * C

    # NOTE: reference Block scales scores by 1/sqrt(n_embd) (C), NOT 1/sqrt(head_size).
    scale = 1.0 / (float(C) ** 0.5)

    # ---- host-side (free) weight prep ----
    # fused QKV weight, scale folded into the Q block
    w_qkv = jnp.concatenate(
        [params['wq'] * scale, params['wk'], params['wv']], axis=1
    ).astype(matmul_dtype)                                            # (C, 3C)
    wp = params['wp'].astype(matmul_dtype)                            # (C, C)
    w1 = params['w1'].astype(matmul_dtype)                            # (C, 4C)
    w2 = params['w2'].astype(matmul_dtype)                            # (4C, C)

    # pack the 7 tiny gain/bias vectors into one (8, 4C) f32 operand (1 DMA)
    vec = jnp.zeros((8, Hid), jnp.float32)
    vec = vec.at[0, :C].set(params['ln1_w'][0])
    vec = vec.at[1, :C].set(params['ln1_b'][0])
    vec = vec.at[2, :C].set(params['ln2_w'][0])
    vec = vec.at[3, :C].set(params['ln2_b'][0])
    vec = vec.at[4, :C].set(params['bp'][0])
    vec = vec.at[5, :].set(params['b1'][0])
    vec = vec.at[6, :C].set(params['b2'][0])

    kernel = functools.partial(_block_kernel, n_head=H, head_size=hs,
                               matmul_dtype=matmul_dtype, approx_recip=approx_recip)

    const2 = lambda b: (0, 0)   # weights: same block every step -> stay resident

    out = pl.pallas_call(
        kernel,
        out_shape=jax.ShapeDtypeStruct((B * T, C), jnp.float32),
        grid_spec=pltpu.PrefetchScalarGridSpec(
            num_scalar_prefetch=0,
            grid=(B,),                                   # one batch element per step
            in_specs=[
                pl.BlockSpec((T, C), lambda b: (b, 0)),   # x rows of batch b
                pl.BlockSpec((8, Hid), const2),           # packed gain/bias vectors
                pl.BlockSpec((C, 3 * C), const2),         # fused QKV weight
                pl.BlockSpec((C, C), const2),             # projection weight
                pl.BlockSpec((C, Hid), const2),           # FFN w1
                pl.BlockSpec((Hid, C), const2),           # FFN w2
            ],
            out_specs=pl.BlockSpec((T, C), lambda b: (b, 0)),
            scratch_shapes=[pltpu.VMEM((T, C), jnp.float32)],
        ),
        compiler_params=pltpu.CompilerParams(
            dimension_semantics=("parallel",),            # v7x: shard batch over 2 TCs
        ),
    )(x.reshape(B * T, C), vec, w_qkv, wp, w1, w2)

    return out.reshape(B, T, C)


def init_params(key):
    ks = jax.random.split(key, 8)
    s = 0.02
    C, Hid = N_EMBD, 4 * N_EMBD
    return {
        'ln1_w': jnp.ones((1, C), jnp.float32),
        'ln1_b': jnp.zeros((1, C), jnp.float32),
        # per-head q/k/v weights concatenated along output dim -> (C, C)
        'wq': s * jax.random.normal(ks[0], (C, C), jnp.float32),
        'wk': s * jax.random.normal(ks[1], (C, C), jnp.float32),
        'wv': s * jax.random.normal(ks[2], (C, C), jnp.float32),
        'wp': s * jax.random.normal(ks[3], (C, C), jnp.float32),
        'bp': s * jax.random.normal(ks[4], (1, C), jnp.float32),
        'ln2_w': jnp.ones((1, C), jnp.float32),
        'ln2_b': jnp.zeros((1, C), jnp.float32),
        'w1': s * jax.random.normal(ks[5], (C, Hid), jnp.float32),
        'b1': jnp.zeros((1, Hid), jnp.float32),
        'w2': s * jax.random.normal(ks[6], (Hid, C), jnp.float32),
        'b2': jnp.zeros((1, C), jnp.float32),
    }


def block_forward_ref(x, p):
    """Pure-JAX reference for correctness checking (mirrors the PyTorch Block)."""
    def ln(v, w, b):
        mu = jnp.mean(v, -1, keepdims=True)
        var = jnp.mean((v - mu) ** 2, -1, keepdims=True)
        return (v - mu) * jax.lax.rsqrt(var + LN_EPS) * w + b

    B, T, C = x.shape
    h = ln(x, p['ln1_w'][0], p['ln1_b'][0])
    q = h @ p['wq']; k = h @ p['wk']; v = h @ p['wv']
    q = q.reshape(B, T, N_HEAD, HEAD_SIZE).transpose(0, 2, 1, 3)
    k = k.reshape(B, T, N_HEAD, HEAD_SIZE).transpose(0, 2, 1, 3)
    v = v.reshape(B, T, N_HEAD, HEAD_SIZE).transpose(0, 2, 1, 3)
    s = jnp.einsum('bhqd,bhkd->bhqk', q, k) / (C ** 0.5)
    mask = jnp.tril(jnp.ones((T, T), bool))
    s = jnp.where(mask, s, -jnp.inf)
    w = jax.nn.softmax(s, -1)
    o = jnp.einsum('bhqk,bhkd->bhqd', w, v).transpose(0, 2, 1, 3).reshape(B, T, C)
    x1 = x + o @ p['wp'] + p['bp'][0]
    h2 = ln(x1, p['ln2_w'][0], p['ln2_b'][0])
    f = jnp.maximum(h2 @ p['w1'] + p['b1'][0], 0.0) @ p['w2'] + p['b2'][0]
    return x1 + f


if __name__ == "__main__":
    key = jax.random.PRNGKey(0)
    kx, kp = jax.random.split(key)
    x = jax.random.normal(kx, (BATCH, SEQ, N_EMBD), jnp.float32)
    params = init_params(kp)

    ref = block_forward_ref(x, params)

    # f32 matmul operands (v5e-friendly default): tight correctness check
    out = jax.block_until_ready(block_forward(x, params, matmul_dtype=jnp.float32))
    assert out.shape == (BATCH, SEQ, N_EMBD)
    assert jnp.all(jnp.isfinite(out))
    # tolerance accounts for approx-reciprocal softmax normalization (EUP path)
    assert jnp.allclose(out, ref, atol=1e-3, rtol=1e-3)

    # bf16 matmul-operand path (v6e/v7x MXU-native): looser tolerance vs f32 ref
    out_bf16 = jax.block_until_ready(block_forward(x, params, matmul_dtype=jnp.bfloat16))
    assert jnp.all(jnp.isfinite(out_bf16))
    assert jnp.allclose(out_bf16, ref, atol=2e-2, rtol=2e-2)

    print("KERNEL_OK")
</pallas_src>

<mosaic_0001>
module attributes {stable_mosaic.version = 11 : i64} {
  func.func @_block_kernel(%arg0: i32, %arg1: memref<8x48xf32, #tpu.memory_space<vmem>>, %arg2: memref<8x192xf32, #tpu.memory_space<vmem>>, %arg3: memref<48x144xf32, #tpu.memory_space<vmem>>, %arg4: memref<48x48xf32, #tpu.memory_space<vmem>>, %arg5: memref<48x192xf32, #tpu.memory_space<vmem>>, %arg6: memref<192x48xf32, #tpu.memory_space<vmem>>, %arg7: memref<8x48xf32, #tpu.memory_space<vmem>>, %arg8: memref<8x48xf32, #tpu.memory_space<vmem>>) attributes {dimension_semantics = [#tpu.dimension_semantics<parallel>], iteration_bounds = array<i64: 2>, scalar_prefetch = 0 : i64, scratch_operands = 1 : i64, tpu.core_type = #tpu.core_type<tc>, window_params = [{transform_indices = @transform_0, window_bounds = array<i64: 8, 48>}, {pipeline_mode = #tpu.pipeline_mode<synchronous>, transform_indices = @transform_1, window_bounds = array<i64: 8, 192>}, {pipeline_mode = #tpu.pipeline_mode<synchronous>, transform_indices = @transform_2, window_bounds = array<i64: 48, 144>}, {pipeline_mode = #tpu.pipeline_mode<synchronous>, transform_indices = @transform_3, window_bounds = array<i64: 48, 48>}, {pipeline_mode = #tpu.pipeline_mode<synchronous>, transform_indices = @transform_4, window_bounds = array<i64: 48, 192>}, {pipeline_mode = #tpu.pipeline_mode<synchronous>, transform_indices = @transform_5, window_bounds = array<i64: 192, 48>}, {transform_indices = @transform_6, window_bounds = array<i64: 8, 48>}]} {
    %c0 = arith.constant 0 : index
    %c0_0 = arith.constant 0 : index
    %0 = vector.load %arg1[%c0, %c0_0] : memref<8x48xf32, #tpu.memory_space<vmem>>, vector<8x48xf32>
    %c0_1 = arith.constant 0 : index
    %c0_2 = arith.constant 0 : index
    %1 = vector.load %arg2[%c0_1, %c0_2] : memref<8x192xf32, #tpu.memory_space<vmem>>, vector<1x48xf32>
    %c1 = arith.constant 1 : index
    %c0_3 = arith.constant 0 : index
    %2 = vector.load %arg2[%c1, %c0_3] : memref<8x192xf32, #tpu.memory_space<vmem>>, vector<1x48xf32>
    %c2 = arith.constant 2 : index
    %c0_4 = arith.constant 0 : index
    %3 = vector.load %arg2[%c2, %c0_4] : memref<8x192xf32, #tpu.memory_space<vmem>>, vector<1x48xf32>
    %c3 = arith.constant 3 : index
    %c0_5 = arith.constant 0 : index
    %4 = vector.load %arg2[%c3, %c0_5] : memref<8x192xf32, #tpu.memory_space<vmem>>, vector<1x48xf32>
    %c4 = arith.constant 4 : index
    %c0_6 = arith.constant 0 : index
    %5 = vector.load %arg2[%c4, %c0_6] : memref<8x192xf32, #tpu.memory_space<vmem>>, vector<1x48xf32>
    %c5 = arith.constant 5 : index
    %c0_7 = arith.constant 0 : index
    %6 = vector.load %arg2[%c5, %c0_7] : memref<8x192xf32, #tpu.memory_space<vmem>>, vector<1x192xf32>
    %c6 = arith.constant 6 : index
    %c0_8 = arith.constant 0 : index
    %7 = vector.load %arg2[%c6, %c0_8] : memref<8x192xf32, #tpu.memory_space<vmem>>, vector<1x48xf32>
    %cst = arith.constant dense<0.000000e+00> : vector<8xf32>
    %8 = vector.multi_reduction <add>, %0, %cst [1] : vector<8x48xf32> to vector<8xf32>
    %9 = vector.shape_cast %8 : vector<8xf32> to vector<8x1xf32>
    %cst_9 = arith.constant 4.800000e+01 : f32
    %10 = vector.broadcast %cst_9 : f32 to vector<8x1xf32>
    %11 = arith.divf %9, %10 : vector<8x1xf32>
    %12 = vector.broadcast %11 : vector<8x1xf32> to vector<8x48xf32>
    %13 = arith.subf %0, %12 : vector<8x48xf32>
    %14 = arith.mulf %13, %13 : vector<8x48xf32>
    %cst_10 = arith.constant dense<0.000000e+00> : vector<8xf32>
    %15 = vector.multi_reduction <add>, %14, %cst_10 [1] : vector<8x48xf32> to vector<8xf32>
    %16 = vector.shape_cast %15 : vector<8xf32> to vector<8x1xf32>
    %cst_11 = arith.constant 4.800000e+01 : f32
    %17 = vector.broadcast %cst_11 : f32 to vector<8x1xf32>
    %18 = arith.divf %16, %17 : vector<8x1xf32>
    %19 = vector.broadcast %11 : vector<8x1xf32> to vector<8x48xf32>
    %20 = arith.subf %0, %19 : vector<8x48xf32>
    %cst_12 = arith.constant 9.99999974E-6 : f32
    %21 = vector.broadcast %cst_12 : f32 to vector<8x1xf32>
    %22 = arith.addf %18, %21 : vector<8x1xf32>
    %23 = math.rsqrt %22 : vector<8x1xf32>
    %24 = vector.broadcast %23 : vector<8x1xf32> to vector<8x48xf32>
    %25 = arith.mulf %20, %24 : vector<8x48xf32>
    %26 = vector.broadcast %1 : vector<1x48xf32> to vector<8x48xf32>
    %27 = arith.mulf %25, %26 : vector<8x48xf32>
    %28 = vector.broadcast %2 : vector<1x48xf32> to vector<8x48xf32>
    %29 = arith.addf %27, %28 : vector<8x48xf32>
    %c0_13 = arith.constant 0 : index
    %c0_14 = arith.constant 0 : index
    %30 = vector.load %arg3[%c0_13, %c0_14] : memref<48x144xf32, #tpu.memory_space<vmem>>, vector<48x144xf32>
    %cst_15 = arith.constant dense<0.000000e+00> : vector<8x144xf32>
    %31 = tpu.matmul %29, %30, %cst_15 {dimension_numbers = #tpu.dot_dimension_numbers<[1], [0], [0], [1], [0, 0, 1, 1], [], []>} : vector<8x48xf32>, vector<48x144xf32>, vector<8x144xf32> -> vector<8x144xf32>
    %32 = tpu.iota {dimensions = array<i32: 0>} : vector<8x8xi32>
    %33 = tpu.iota {dimensions = array<i32: 1>} : vector<8x8xi32>
    %34 = arith.cmpi sle, %33, %32 : vector<8x8xi32>
    %cst_16 = arith.constant 0.000000e+00 : f32
    %cst_17 = arith.constant -1.000000e+30 : f32
    %35 = vector.broadcast %cst_16 : f32 to vector<8x8xf32>
    %36 = vector.broadcast %cst_17 : f32 to vector<8x8xf32>
    %37 = arith.select %34, %35, %36 : vector<8x8xi1>, vector<8x8xf32>
    %38 = vector.extract_strided_slice %31 {offsets = [0, 0], sizes = [8, 8], strides = [1, 1]} : vector<8x144xf32> to vector<8x8xf32>
    %39 = vector.extract_strided_slice %31 {offsets = [0, 48], sizes = [8, 8], strides = [1, 1]} : vector<8x144xf32> to vector<8x8xf32>
    %40 = vector.extract_strided_slice %31 {offsets = [0, 96], sizes = [8, 8], strides = [1, 1]} : vector<8x144xf32> to vector<8x8xf32>
    %cst_18 = arith.constant dense<0.000000e+00> : vector<8x8xf32>
    %41 = tpu.matmul %38, %39, %cst_18 {dimension_numbers = #tpu.dot_dimension_numbers<[1], [1], [0], [0], [0, 0, 1, 0], [], []>} : vector<8x8xf32>, vector<8x8xf32>, vector<8x8xf32> -> vector<8x8xf32>
    %42 = arith.addf %41, %37 : vector<8x8xf32>
    %cst_19 = arith.constant dense<0xFF800000> : vector<8xf32>
    %43 = vector.multi_reduction <maximumf>, %42, %cst_19 [1] : vector<8x8xf32> to vector<8xf32>
    %44 = vector.shape_cast %43 : vector<8xf32> to vector<8x1xf32>
    %45 = vector.broadcast %44 : vector<8x1xf32> to vector<8x8xf32>
    %46 = arith.subf %42, %45 : vector<8x8xf32>
    %47 = math.exp %46 : vector<8x8xf32>
    %cst_20 = arith.constant dense<0.000000e+00> : vector<8xf32>
    %48 = vector.multi_reduction <add>, %47, %cst_20 [1] : vector<8x8xf32> to vector<8xf32>
    %49 = vector.shape_cast %48 : vector<8xf32> to vector<8x1xf32>
    %50 = tpu.reciprocal %49 {approx = true} : vector<8x1xf32> -> vector<8x1xf32>
    %51 = vector.broadcast %50 : vector<8x1xf32> to vector<8x8xf32>
    %52 = arith.mulf %47, %51 : vector<8x8xf32>
    %cst_21 = arith.constant dense<0.000000e+00> : vector<8x8xf32>
    %53 = tpu.matmul %52, %40, %cst_21 {dimension_numbers = #tpu.dot_dimension_numbers<[1], [0], [0], [1], [0, 0, 1, 1], [], []>} : vector<8x8xf32>, vector<8x8xf32>, vector<8x8xf32> -> vector<8x8xf32>
    %c0_22 = arith.constant 0 : index
    %c0_23 = arith.constant 0 : index
    %54 = vector.load %arg8[%c0_22, %c0_23] : memref<8x48xf32, #tpu.memory_space<vmem>>, vector<8x8xf32>
    tpu.vector_store %arg8[%c0_22, %c0_23], %53 {strides = array<i32>} : memref<8x48xf32, #tpu.memory_space<vmem>>, vector<8x8xf32>,
    %55 = vector.extract_strided_slice %31 {offsets = [0, 8], sizes = [8, 8], strides = [1, 1]} : vector<8x144xf32> to vector<8x8xf32>
    %56 = vector.extract_strided_slice %31 {offsets = [0, 56], sizes = [8, 8], strides = [1, 1]} : vector<8x144xf32> to vector<8x8xf32>
    %57 = vector.extract_strided_slice %31 {offsets = [0, 104], sizes = [8, 8], strides = [1, 1]} : vector<8x144xf32> to vector<8x8xf32>
    %cst_24 = arith.constant dense<0.000000e+00> : vector<8x8xf32>
    %58 = tpu.matmul %55, %56, %cst_24 {dimension_numbers = #tpu.dot_dimension_numbers<[1], [1], [0], [0], [0, 0, 1, 0], [], []>} : vector<8x8xf32>, vector<8x8xf32>, vector<8x8xf32> -> vector<8x8xf32>
    %59 = arith.addf %58, %37 : vector<8x8xf32>
    %cst_25 = arith.constant dense<0xFF800000> : vector<8xf32>
    %60 = vector.multi_reduction <maximumf>, %59, %cst_25 [1] : vector<8x8xf32> to vector<8xf32>
    %61 = vector.shape_cast %60 : vector<8xf32> to vector<8x1xf32>
    %62 = vector.broadcast %61 : vector<8x1xf32> to vector<8x8xf32>
    %63 = arith.subf %59, %62 : vector<8x8xf32>
    %64 = math.exp %63 : vector<8x8xf32>
    %cst_26 = arith.constant dense<0.000000e+00> : vector<8xf32>
    %65 = vector.multi_reduction <add>, %64, %cst_26 [1] : vector<8x8xf32> to vector<8xf32>
    %66 = vector.shape_cast %65 : vector<8xf32> to vector<8x1xf32>
    %67 = tpu.reciprocal %66 {approx = true} : vector<8x1xf32> -> vector<8x1xf32>
    %68 = vector.broadcast %67 : vector<8x1xf32> to vector<8x8xf32>
    %69 = arith.mulf %64, %68 : vector<8x8xf32>
    %cst_27 = arith.constant dense<0.000000e+00> : vector<8x8xf32>
    %70 = tpu.matmul %69, %57, %cst_27 {dimension_numbers = #tpu.dot_dimension_numbers<[1], [0], [0], [1], [0, 0, 1, 1], [], []>} : vector<8x8xf32>, vector<8x8xf32>, vector<8x8xf32> -> vector<8x8xf32>
    %c0_28 = arith.constant 0 : index
    %c8 = arith.constant 8 : index
    %71 = vector.load %arg8[%c0_28, %c8] : memref<8x48xf32, #tpu.memory_space<vmem>>, vector<8x8xf32>
    tpu.vector_store %arg8[%c0_28, %c8], %70 {strides = array<i32>} : memref<8x48xf32, #tpu.memory_space<vmem>>, vector<8x8xf32>,
    %72 = vector.extract_strided_slice %31 {offsets = [0, 16], sizes = [8, 8], strides = [1, 1]} : vector<8x144xf32> to vector<8x8xf32>
    %73 = vector.extract_strided_slice %31 {offsets = [0, 64], sizes = [8, 8], strides = [1, 1]} : vector<8x144xf32> to vector<8x8xf32>
    %74 = vector.extract_strided_slice %31 {offsets = [0, 112], sizes = [8, 8], strides = [1, 1]} : vector<8x144xf32> to vector<8x8xf32>
    %cst_29 = arith.constant dense<0.000000e+00> : vector<8x8xf32>
    %75 = tpu.matmul %72, %73, %cst_29 {dimension_numbers = #tpu.dot_dimension_numbers<[1], [1], [0], [0], [0, 0, 1, 0], [], []>} : vector<8x8xf32>, vector<8x8xf32>, vector<8x8xf32> -> vector<8x8xf32>
    %76 = arith.addf %75, %37 : vector<8x8xf32>
    %cst_30 = arith.constant dense<0xFF800000> : vector<8xf32>
    %77 = vector.multi_reduction <maximumf>, %76, %cst_30 [1] : vector<8x8xf32> to vector<8xf32>
    %78 = vector.shape_cast %77 : vector<8xf32> to vector<8x1xf32>
    %79 = vector.broadcast %78 : vector<8x1xf32> to vector<8x8xf32>
    %80 = arith.subf %76, %79 : vector<8x8xf32>
    %81 = math.exp %80 : vector<8x8xf32>
    %cst_31 = arith.constant dense<0.000000e+00> : vector<8xf32>
    %82 = vector.multi_reduction <add>, %81, %cst_31 [1] : vector<8x8xf32> to vector<8xf32>
    %83 = vector.shape_cast %82 : vector<8xf32> to vector<8x1xf32>
    %84 = tpu.reciprocal %83 {approx = true} : vector<8x1xf32> -> vector<8x1xf32>
    %85 = vector.broadcast %84 : vector<8x1xf32> to vector<8x8xf32>
    %86 = arith.mulf %81, %85 : vector<8x8xf32>
    %cst_32 = arith.constant dense<0.000000e+00> : vector<8x8xf32>
    %87 = tpu.matmul %86, %74, %cst_32 {dimension_numbers = #tpu.dot_dimension_numbers<[1], [0], [0], [1], [0, 0, 1, 1], [], []>} : vector<8x8xf32>, vector<8x8xf32>, vector<8x8xf32> -> vector<8x8xf32>
    %c0_33 = arith.constant 0 : index
    %c16 = arith.constant 16 : index
    %88 = vector.load %arg8[%c0_33, %c16] : memref<8x48xf32, #tpu.memory_space<vmem>>, vector<8x8xf32>
    tpu.vector_store %arg8[%c0_33, %c16], %87 {strides = array<i32>} : memref<8x48xf32, #tpu.memory_space<vmem>>, vector<8x8xf32>,
    %89 = vector.extract_strided_slice %31 {offsets = [0, 24], sizes = [8, 8], strides = [1, 1]} : vector<8x144xf32> to vector<8x8xf32>
    %90 = vector.extract_strided_slice %31 {offsets = [0, 72], sizes = [8, 8], strides = [1, 1]} : vector<8x144xf32> to vector<8x8xf32>
    %91 = vector.extract_strided_slice %31 {offsets = [0, 120], sizes = [8, 8], strides = [1, 1]} : vector<8x144xf32> to vector<8x8xf32>
    %cst_34 = arith.constant dense<0.000000e+00> : vector<8x8xf32>
    %92 = tpu.matmul %89, %90, %cst_34 {dimension_numbers = #tpu.dot_dimension_numbers<[1], [1], [0], [0], [0, 0, 1, 0], [], []>} : vector<8x8xf32>, vector<8x8xf32>, vector<8x8xf32> -> vector<8x8xf32>
    %93 = arith.addf %92, %37 : vector<8x8xf32>
    %cst_35 = arith.constant dense<0xFF800000> : vector<8xf32>
    %94 = vector.multi_reduction <maximumf>, %93, %cst_35 [1] : vector<8x8xf32> to vector<8xf32>
    %95 = vector.shape_cast %94 : vector<8xf32> to vector<8x1xf32>
    %96 = vector.broadcast %95 : vector<8x1xf32> to vector<8x8xf32>
    %97 = arith.subf %93, %96 : vector<8x8xf32>
    %98 = math.exp %97 : vector<8x8xf32>
    %cst_36 = arith.constant dense<0.000000e+00> : vector<8xf32>
    %99 = vector.multi_reduction <add>, %98, %cst_36 [1] : vector<8x8xf32> to vector<8xf32>
    %100 = vector.shape_cast %99 : vector<8xf32> to vector<8x1xf32>
    %101 = tpu.reciprocal %100 {approx = true} : vector<8x1xf32> -> vector<8x1xf32>
    %102 = vector.broadcast %101 : vector<8x1xf32> to vector<8x8xf32>
    %103 = arith.mulf %98, %102 : vector<8x8xf32>
    %cst_37 = arith.constant dense<0.000000e+00> : vector<8x8xf32>
    %104 = tpu.matmul %103, %91, %cst_37 {dimension_numbers = #tpu.dot_dimension_numbers<[1], [0], [0], [1], [0, 0, 1, 1], [], []>} : vector<8x8xf32>, vector<8x8xf32>, vector<8x8xf32> -> vector<8x8xf32>
    %c0_38 = arith.constant 0 : index
    %c24 = arith.constant 24 : index
    %105 = vector.load %arg8[%c0_38, %c24] : memref<8x48xf32, #tpu.memory_space<vmem>>, vector<8x8xf32>
    tpu.vector_store %arg8[%c0_38, %c24], %104 {strides = array<i32>} : memref<8x48xf32, #tpu.memory_space<vmem>>, vector<8x8xf32>,
    %106 = vector.extract_strided_slice %31 {offsets = [0, 32], sizes = [8, 8], strides = [1, 1]} : vector<8x144xf32> to vector<8x8xf32>
    %107 = vector.extract_strided_slice %31 {offsets = [0, 80], sizes = [8, 8], strides = [1, 1]} : vector<8x144xf32> to vector<8x8xf32>
    %108 = vector.extract_strided_slice %31 {offsets = [0, 128], sizes = [8, 8], strides = [1, 1]} : vector<8x144xf32> to vector<8x8xf32>
    %cst_39 = arith.constant dense<0.000000e+00> : vector<8x8xf32>
    %109 = tpu.matmul %106, %107, %cst_39 {dimension_numbers = #tpu.dot_dimension_numbers<[1], [1], [0], [0], [0, 0, 1, 0], [], []>} : vector<8x8xf32>, vector<8x8xf32>, vector<8x8xf32> -> vector<8x8xf32>
    %110 = arith.addf %109, %37 : vector<8x8xf32>
    %cst_40 = arith.constant dense<0xFF800000> : vector<8xf32>
    %111 = vector.multi_reduction <maximumf>, %110, %cst_40 [1] : vector<8x8xf32> to vector<8xf32>
    %112 = vector.shape_cast %111 : vector<8xf32> to vector<8x1xf32>
    %113 = vector.broadcast %112 : vector<8x1xf32> to vector<8x8xf32>
    %114 = arith.subf %110, %113 : vector<8x8xf32>
    %115 = math.exp %114 : vector<8x8xf32>
    %cst_41 = arith.constant dense<0.000000e+00> : vector<8xf32>
    %116 = vector.multi_reduction <add>, %115, %cst_41 [1] : vector<8x8xf32> to vector<8xf32>
    %117 = vector.shape_cast %116 : vector<8xf32> to vector<8x1xf32>
    %118 = tpu.reciprocal %117 {approx = true} : vector<8x1xf32> -> vector<8x1xf32>
    %119 = vector.broadcast %118 : vector<8x1xf32> to vector<8x8xf32>
    %120 = arith.mulf %115, %119 : vector<8x8xf32>
    %cst_42 = arith.constant dense<0.000000e+00> : vector<8x8xf32>
    %121 = tpu.matmul %120, %108, %cst_42 {dimension_numbers = #tpu.dot_dimension_numbers<[1], [0], [0], [1], [0, 0, 1, 1], [], []>} : vector<8x8xf32>, vector<8x8xf32>, vector<8x8xf32> -> vector<8x8xf32>
    %c0_43 = arith.constant 0 : index
    %c32 = arith.constant 32 : index
    %122 = vector.load %arg8[%c0_43, %c32] : memref<8x48xf32, #tpu.memory_space<vmem>>, vector<8x8xf32>
    tpu.vector_store %arg8[%c0_43, %c32], %121 {strides = array<i32>} : memref<8x48xf32, #tpu.memory_space<vmem>>, vector<8x8xf32>,
    %123 = vector.extract_strided_slice %31 {offsets = [0, 40], sizes = [8, 8], strides = [1, 1]} : vector<8x144xf32> to vector<8x8xf32>
    %124 = vector.extract_strided_slice %31 {offsets = [0, 88], sizes = [8, 8], strides = [1, 1]} : vector<8x144xf32> to vector<8x8xf32>
    %125 = vector.extract_strided_slice %31 {offsets = [0, 136], sizes = [8, 8], strides = [1, 1]} : vector<8x144xf32> to vector<8x8xf32>
    %cst_44 = arith.constant dense<0.000000e+00> : vector<8x8xf32>
    %126 = tpu.matmul %123, %124, %cst_44 {dimension_numbers = #tpu.dot_dimension_numbers<[1], [1], [0], [0], [0, 0, 1, 0], [], []>} : vector<8x8xf32>, vector<8x8xf32>, vector<8x8xf32> -> vector<8x8xf32>
    %127 = arith.addf %126, %37 : vector<8x8xf32>
    %cst_45 = arith.constant dense<0xFF800000> : vector<8xf32>
    %128 = vector.multi_reduction <maximumf>, %127, %cst_45 [1] : vector<8x8xf32> to vector<8xf32>
    %129 = vector.shape_cast %128 : vector<8xf32> to vector<8x1xf32>
    %130 = vector.broadcast %129 : vector<8x1xf32> to vector<8x8xf32>
    %131 = arith.subf %127, %130 : vector<8x8xf32>
    %132 = math.exp %131 : vector<8x8xf32>
    %cst_46 = arith.constant dense<0.000000e+00> : vector<8xf32>
    %133 = vector.multi_reduction <add>, %132, %cst_46 [1] : vector<8x8xf32> to vector<8xf32>
    %134 = vector.shape_cast %133 : vector<8xf32> to vector<8x1xf32>
    %135 = tpu.reciprocal %134 {approx = true} : vector<8x1xf32> -> vector<8x1xf32>
    %136 = vector.broadcast %135 : vector<8x1xf32> to vector<8x8xf32>
    %137 = arith.mulf %132, %136 : vector<8x8xf32>
    %cst_47 = arith.constant dense<0.000000e+00> : vector<8x8xf32>
    %138 = tpu.matmul %137, %125, %cst_47 {dimension_numbers = #tpu.dot_dimension_numbers<[1], [0], [0], [1], [0, 0, 1, 1], [], []>} : vector<8x8xf32>, vector<8x8xf32>, vector<8x8xf32> -> vector<8x8xf32>
    %c0_48 = arith.constant 0 : index
    %c40 = arith.constant 40 : index
    %139 = vector.load %arg8[%c0_48, %c40] : memref<8x48xf32, #tpu.memory_space<vmem>>, vector<8x8xf32>
    tpu.vector_store %arg8[%c0_48, %c40], %138 {strides = array<i32>} : memref<8x48xf32, #tpu.memory_space<vmem>>, vector<8x8xf32>,
    %c0_49 = arith.constant 0 : index
    %c0_50 = arith.constant 0 : index
    %140 = vector.load %arg8[%c0_49, %c0_50] : memref<8x48xf32, #tpu.memory_space<vmem>>, vector<8x48xf32>
    %c0_51 = arith.constant 0 : index
    %c0_52 = arith.constant 0 : index
    %141 = vector.load %arg4[%c0_51, %c0_52] : memref<48x48xf32, #tpu.memory_space<vmem>>, vector<48x48xf32>
    %cst_53 = arith.constant dense<0.000000e+00> : vector<8x48xf32>
    %142 = tpu.matmul %140, %141, %cst_53 {dimension_numbers = #tpu.dot_dimension_numbers<[1], [0], [0], [1], [0, 0, 1, 1], [], []>} : vector<8x48xf32>, vector<48x48xf32>, vector<8x48xf32> -> vector<8x48xf32>
    %143 = vector.broadcast %5 : vector<1x48xf32> to vector<8x48xf32>
    %144 = arith.addf %142, %143 : vector<8x48xf32>
    %145 = arith.addf %0, %144 : vector<8x48xf32>
    %cst_54 = arith.constant dense<0.000000e+00> : vector<8xf32>
    %146 = vector.multi_reduction <add>, %145, %cst_54 [1] : vector<8x48xf32> to vector<8xf32>
    %147 = vector.shape_cast %146 : vector<8xf32> to vector<8x1xf32>
    %cst_55 = arith.constant 4.800000e+01 : f32
    %148 = vector.broadcast %cst_55 : f32 to vector<8x1xf32>
    %149 = arith.divf %147, %148 : vector<8x1xf32>
    %150 = vector.broadcast %149 : vector<8x1xf32> to vector<8x48xf32>
    %151 = arith.subf %145, %150 : vector<8x48xf32>
    %152 = arith.mulf %151, %151 : vector<8x48xf32>
    %cst_56 = arith.constant dense<0.000000e+00> : vector<8xf32>
    %153 = vector.multi_reduction <add>, %152, %cst_56 [1] : vector<8x48xf32> to vector<8xf32>
    %154 = vector.shape_cast %153 : vector<8xf32> to vector<8x1xf32>
    %cst_57 = arith.constant 4.800000e+01 : f32
    %155 = vector.broadcast %cst_57 : f32 to vector<8x1xf32>
    %156 = arith.divf %154, %155 : vector<8x1xf32>
    %157 = vector.broadcast %149 : vector<8x1xf32> to vector<8x48xf32>
    %158 = arith.subf %145, %157 : vector<8x48xf32>
    %cst_58 = arith.constant 9.99999974E-6 : f32
    %159 = vector.broadcast %cst_58 : f32 to vector<8x1xf32>
    %160 = arith.addf %156, %159 : vector<8x1xf32>
    %161 = math.rsqrt %160 : vector<8x1xf32>
    %162 = vector.broadcast %161 : vector<8x1xf32> to vector<8x48xf32>
    %163 = arith.mulf %158, %162 : vector<8x48xf32>
    %164 = vector.broadcast %3 : vector<1x48xf32> to vector<8x48xf32>
    %165 = arith.mulf %163, %164 : vector<8x48xf32>
    %166 = vector.broadcast %4 : vector<1x48xf32> to vector<8x48xf32>
    %167 = arith.addf %165, %166 : vector<8x48xf32>
    %c0_59 = arith.constant 0 : index
    %c0_60 = arith.constant 0 : index
    %168 = vector.load %arg5[%c0_59, %c0_60] : memref<48x192xf32, #tpu.memory_space<vmem>>, vector<48x192xf32>
    %cst_61 = arith.constant dense<0.000000e+00> : vector<8x192xf32>
    %169 = tpu.matmul %167, %168, %cst_61 {dimension_numbers = #tpu.dot_dimension_numbers<[1], [0], [0], [1], [0, 0, 1, 1], [], []>} : vector<8x48xf32>, vector<48x192xf32>, vector<8x192xf32> -> vector<8x192xf32>
    %170 = vector.broadcast %6 : vector<1x192xf32> to vector<8x192xf32>
    %171 = arith.addf %169, %170 : vector<8x192xf32>
    %cst_62 = arith.constant 0.000000e+00 : f32
    %172 = vector.broadcast %cst_62 : f32 to vector<8x192xf32>
    %173 = arith.maximumf %171, %172 : vector<8x192xf32>
    %c0_63 = arith.constant 0 : index
    %c0_64 = arith.constant 0 : index
    %174 = vector.load %arg6[%c0_63, %c0_64] : memref<192x48xf32, #tpu.memory_space<vmem>>, vector<192x48xf32>
    %cst_65 = arith.constant dense<0.000000e+00> : vector<8x48xf32>
    %175 = tpu.matmul %173, %174, %cst_65 {dimension_numbers = #tpu.dot_dimension_numbers<[1], [0], [0], [1], [0, 0, 1, 1], [], []>} : vector<8x192xf32>, vector<192x48xf32>, vector<8x48xf32> -> vector<8x48xf32>
    %176 = vector.broadcast %7 : vector<1x48xf32> to vector<8x48xf32>
    %177 = arith.addf %175, %176 : vector<8x48xf32>
    %178 = arith.addf %145, %177 : vector<8x48xf32>
    %c0_66 = arith.constant 0 : index
    %c0_67 = arith.constant 0 : index
    %179 = vector.load %arg7[%c0_66, %c0_67] : memref<8x48xf32, #tpu.memory_space<vmem>>, vector<8x48xf32>
    tpu.vector_store %arg7[%c0_66, %c0_67], %178 {strides = array<i32>} : memref<8x48xf32, #tpu.memory_space<vmem>>, vector<8x48xf32>,
    return
  }
  func.func @transform_0(%arg0: i32) -> (i32, i32) {
    %c0_i32 = arith.constant 0 : i32
    %c0_i32_0 = arith.constant 0 : i32
    return %arg0, %c0_i32 : i32, i32
  }
  func.func @transform_1(%arg0: i32) -> (i32, i32) {
    %c0_i32 = arith.constant 0 : i32
    %c0_i32_0 = arith.constant 0 : i32
    %c0_i32_1 = arith.constant 0 : i32
    return %c0_i32, %c0_i32_0 : i32, i32
  }
  func.func @transform_2(%arg0: i32) -> (i32, i32) {
    %c0_i32 = arith.constant 0 : i32
    %c0_i32_0 = arith.constant 0 : i32
    %c0_i32_1 = arith.constant 0 : i32
    return %c0_i32, %c0_i32_0 : i32, i32
  }
  func.func @transform_3(%arg0: i32) -> (i32, i32) {
    %c0_i32 = arith.constant 0 : i32
    %c0_i32_0 = arith.constant 0 : i32
    %c0_i32_1 = arith.constant 0 : i32
    return %c0_i32, %c0_i32_0 : i32, i32
  }
  func.func @transform_4(%arg0: i32) -> (i32, i32) {
    %c0_i32 = arith.constant 0 : i32
    %c0_i32_0 = arith.constant 0 : i32
    %c0_i32_1 = arith.constant 0 : i32
    return %c0_i32, %c0_i32_0 : i32, i32
  }
  func.func @transform_5(%arg0: i32) -> (i32, i32) {
    %c0_i32 = arith.constant 0 : i32
    %c0_i32_0 = arith.constant 0 : i32
    %c0_i32_1 = arith.constant 0 : i32
    return %c0_i32, %c0_i32_0 : i32, i32
  }
  func.func @transform_6(%arg0: i32) -> (i32, i32) {
    %c0_i32 = arith.constant 0 : i32
    %c0_i32_0 = arith.constant 0 : i32
    return %arg0, %c0_i32 : i32, i32
  }
}

</mosaic_0001>

<llo_original>
// kernel: tpu_custom_call.1
$region0: #{tpu_custom_call.1}
  #allocation0 [shape = 'u32[]', space=smem, size = 0x4, offset = 0x4, fixed_abs, tag = 'smem constant byte address 0x4 - core index']
  #allocation1 [shape = 'u32[144,128]{1,0:T(1,128)}', space=vmem, size = 0x12000, scoped, tag = 'internal scratch']
  #allocation2 [shape = 'f32[8,48]{1,0:T(8,128)}', space=vmem, size = 0x1000, scoped, tag = 'scratch operand']
  %s0 = inlined_call_operand.vmem [shape: f32[16,48], index: 0, kind: input, shape index: {}]
  %s1 = inlined_call_operand.vmem [shape: f32[8,192], index: 1, kind: input, shape index: {}]
  %s2 = inlined_call_operand.vmem [shape: f32[48,144], index: 2, kind: input, shape index: {}]
  %s3 = inlined_call_operand.vmem [shape: f32[48,48], index: 3, kind: input, shape index: {}]
  %s4 = inlined_call_operand.vmem [shape: f32[48,192], index: 4, kind: input, shape index: {}]
  %s5 = inlined_call_operand.vmem [shape: f32[192,48], index: 5, kind: input, shape index: {}]
  %s6 = inlined_call_operand.hbm [shape: f32[16,48], index: 6, kind: output, shape index: {}]
  %s7 = sld [smem:[#allocation0]]
  $region57: #{tpu_custom_call.1} parent=0
    _
  %s9 = ssub.s32 1, %s7
  %s10 = scalar_select 0, %s9, %s7
  $region1: #{tpu_custom_call.1} parent=0
    #allocation3 [shape = 'u8[8192]{0}', space=vmem, size = 0x2000, scoped, tag = 'output window, operand 0']
    #allocation4 [shape = 's32[2]{0}', space=sflag, size = 0x8, scoped, tag = 'scoped memory for tpu_custom_call.1']
    %11 = vsyncpa [#allocation4], 0
    %s12 = scalar_lea.sflag [#allocation4], 1
    %13 = vsyncpa %s12, 0
    loop: start=0, step=1, limit=4
    $region2: #{tpu_custom_call.1} parent=1 // loop_pre_header
      _
    $region3: #{tpu_custom_call.1} parent=1 // loop_header
      %s15 = sphi 0, %s19
      %p16 = scmp.ge.s32.totalorder %s15, 4
      %s25 = sphi 0, %s27
      %s28 = sphi 0, %s25
      %s29 = sphi 0, %s28
      %s45 = sphi 0, %s29
      %s49 = sphi 0, %s49
      %s51 = sphi 0, %s49
      %s52 = sphi 0, %s51
      %s66 = sphi 0, %s52
      %s70 = sphi 0, %s70
      %s72 = sphi 0, %s70
      %s73 = sphi 0, %s72
      %s87 = sphi 0, %s73
      %s91 = sphi 0, %s91
      %s93 = sphi 0, %s91
      %s94 = sphi 0, %s93
      %s108 = sphi 0, %s94
      %s112 = sphi 0, %s112
      %s114 = sphi 0, %s112
      %s115 = sphi 0, %s114
      %s129 = sphi 0, %s115
      %s133 = sphi 0, %s133
      %s135 = sphi 0, %s133
      %s136 = sphi 0, %s135
      %s150 = sphi 0, %s136
      %s156 = sphi 0, %s158
      %s159 = sphi 0, %s156
      %s160 = sphi 0, %s159
      %s176 = sphi 0, %s160
    $region4: #{tpu_custom_call.1} parent=1 // loop_header_branch
      %18 = sbr.rel (%p16) target = $region8
    $region5: #{tpu_custom_call.1} parent=1 // loop_body
      %s20 = ssub.s32 %s15, 1
      %s21 = ssub.s32 %s15, 2
      %s22 = sadd.s32 %s15, 1
      %s23 = ssub.s32 %s15, %s22
      %p24 = scmp.eq.s32.totalorder %s23, 0
      %s26 = sadd.s32 %s25, 1
      %s27 = scalar_select %p24, %s25, %s26
      %p30 = pneg %p24
      %p31 = scmp.eq.s32.totalorder %s15, 1
      %p32 = por %p30, %p31
      %p33 = scmp.ne.s32.totalorder %s25, %s28
      %p34 = scmp.eq.s32.totalorder %s15, 0
      %p35 = por %p33, %p34
      %p36 = scmp.ne.s32.totalorder %s25, %s28
      %p37 = scmp.eq.s32.totalorder %s20, 1
      %p38 = por %p36, %p37
      %p39 = scmp.ne.s32.totalorder %s28, %s29
      %p40 = scmp.eq.s32.totalorder %s20, 0
      %p41 = por %p39, %p40
      %p42 = scmp.ne.s32.totalorder %s28, %s29
      %p43 = scmp.eq.s32.totalorder %s21, 1
      %p44 = por %p42, %p43
      %p46 = scmp.ne.s32.totalorder %s29, %s45
      %p47 = scmp.eq.s32.totalorder %s21, 0
      %p48 = por %p46, %p47
      %s50 = sadd.s32 %s49, 1
      %p53 = scmp.eq.s32.totalorder %s15, 1
      %p54 = scmp.ne.s32.totalorder %s49, %s51
      %p55 = scmp.eq.s32.totalorder %s15, 0
      %p56 = por %p54, %p55
      %p57 = scmp.ne.s32.totalorder %s49, %s51
      %p58 = scmp.eq.s32.totalorder %s20, 1
      %p59 = por %p57, %p58
      %p60 = scmp.ne.s32.totalorder %s51, %s52
      %p61 = scmp.eq.s32.totalorder %s20, 0
      %p62 = por %p60, %p61
      %p63 = scmp.ne.s32.totalorder %s51, %s52
      %p64 = scmp.eq.s32.totalorder %s21, 1
      %p65 = por %p63, %p64
      %p67 = scmp.ne.s32.totalorder %s52, %s66
      %p68 = scmp.eq.s32.totalorder %s21, 0
      %p69 = por %p67, %p68
      %s71 = sadd.s32 %s70, 1
      %p74 = scmp.eq.s32.totalorder %s15, 1
      %p75 = scmp.ne.s32.totalorder %s70, %s72
      %p76 = scmp.eq.s32.totalorder %s15, 0
      %p77 = por %p75, %p76
      %p78 = scmp.ne.s32.totalorder %s70, %s72
      %p79 = scmp.eq.s32.totalorder %s20, 1
      %p80 = por %p78, %p79
      %p81 = scmp.ne.s32.totalorder %s72, %s73
      %p82 = scmp.eq.s32.totalorder %s20, 0
      %p83 = por %p81, %p82
      %p84 = scmp.ne.s32.totalorder %s72, %s73
      %p85 = scmp.eq.s32.totalorder %s21, 1
      %p86 = por %p84, %p85
      %p88 = scmp.ne.s32.totalorder %s73, %s87
      %p89 = scmp.eq.s32.totalorder %s21, 0
      %p90 = por %p88, %p89
      %s92 = sadd.s32 %s91, 1
      %p95 = scmp.eq.s32.totalorder %s15, 1
      %p96 = scmp.ne.s32.totalorder %s91, %s93
      %p97 = scmp.eq.s32.totalorder %s15, 0
      %p98 = por %p96, %p97
      %p99 = scmp.ne.s32.totalorder %s91, %s93
      %p100 = scmp.eq.s32.totalorder %s20, 1
      %p101 = por %p99, %p100
      %p102 = scmp.ne.s32.totalorder %s93, %s94
      %p103 = scmp.eq.s32.totalorder %s20, 0
      %p104 = por %p102, %p103
      %p105 = scmp.ne.s32.totalorder %s93, %s94
      %p106 = scmp.eq.s32.totalorder %s21, 1
      %p107 = por %p105, %p106
      %p109 = scmp.ne.s32.totalorder %s94, %s108
      %p110 = scmp.eq.s32.totalorder %s21, 0
      %p111 = por %p109, %p110
      %s113 = sadd.s32 %s112, 1
      %p116 = scmp.eq.s32.totalorder %s15, 1
      %p117 = scmp.ne.s32.totalorder %s112, %s114
      %p118 = scmp.eq.s32.totalorder %s15, 0
      %p119 = por %p117, %p118
      %p120 = scmp.ne.s32.totalorder %s112, %s114
      %p121 = scmp.eq.s32.totalorder %s20, 1
      %p122 = por %p120, %p121
      %p123 = scmp.ne.s32.totalorder %s114, %s115
      %p124 = scmp.eq.s32.totalorder %s20, 0
      %p125 = por %p123, %p124
      %p126 = scmp.ne.s32.totalorder %s114, %s115
      %p127 = scmp.eq.s32.totalorder %s21, 1
      %p128 = por %p126, %p127
      %p130 = scmp.ne.s32.totalorder %s115, %s129
      %p131 = scmp.eq.s32.totalorder %s21, 0
      %p132 = por %p130, %p131
      %s134 = sadd.s32 %s133, 1
      %p137 = scmp.eq.s32.totalorder %s15, 1
      %p138 = scmp.ne.s32.totalorder %s133, %s135
      %p139 = scmp.eq.s32.totalorder %s15, 0
      %p140 = por %p138, %p139
      %p141 = scmp.ne.s32.totalorder %s133, %s135
      %p142 = scmp.eq.s32.totalorder %s20, 1
      %p143 = por %p141, %p142
      %p144 = scmp.ne.s32.totalorder %s135, %s136
      %p145 = scmp.eq.s32.totalorder %s20, 0
      %p146 = por %p144, %p145
      %p147 = scmp.ne.s32.totalorder %s135, %s136
      %p148 = scmp.eq.s32.totalorder %s21, 1
      %p149 = por %p147, %p148
      %p151 = scmp.ne.s32.totalorder %s136, %s150
      %p152 = scmp.eq.s32.totalorder %s21, 0
      %p153 = por %p151, %p152
      %s154 = ssub.s32 %s15, %s22
      %p155 = scmp.eq.s32.totalorder %s154, 0
      %s157 = sadd.s32 %s156, 1
      %s158 = scalar_select %p155, %s156, %s157
      %p161 = pneg %p155
      %p162 = scmp.eq.s32.totalorder %s15, 1
      %p163 = por %p161, %p162
      %p164 = scmp.ne.s32.totalorder %s156, %s159
      %p165 = scmp.eq.s32.totalorder %s15, 0
      %p166 = por %p164, %p165
      %p167 = scmp.ne.s32.totalorder %s156, %s159
      %p168 = scmp.eq.s32.totalorder %s20, 1
      %p169 = por %p167, %p168
      %p170 = scmp.ne.s32.totalorder %s159, %s160
      %p171 = scmp.eq.s32.totalorder %s20, 0
      %p172 = por %p170, %p171
      %p173 = scmp.ne.s32.totalorder %s159, %s160
      %p174 = scmp.eq.s32.totalorder %s21, 1
      %p175 = por %p173, %p174
      %p177 = scmp.ne.s32.totalorder %s160, %s176
      %p178 = scmp.eq.s32.totalorder %s21, 0
      %p179 = por %p177, %p178
      %p180 = scmp.le.s32.totalorder 1, %s15
      %p181 = scmp.lt.s32.totalorder %s15, 3
      %p182 = pnand %p180, %p181
      %p183 = pneg %p182
      // Predicated region
      $region9: #{tpu_custom_call.1} parent=5 // pred_check
        _
      $region10: #{tpu_custom_call.1} parent=5 // pred_check_branch
        %185 = sbr.rel (%p182) target = $region12
      $region11: #{tpu_custom_call.1} parent=5 // pred_region
        %s186 = ssub.s32 %s15, 1
        // Predicated region
        $region13: #{tpu_custom_call.1} parent=11 // pred_check
          %p187 = pneg %p62
        $region14: #{tpu_custom_call.1} parent=11 // pred_check_branch
          %189 = sbr.rel (%p187) target = $region16
        $region15: #{tpu_custom_call.1} parent=11 // pred_region
          _
        $region16: #{tpu_custom_call.1} parent=11 // pred_fallthru
          _
        // Predicated region
        $region17: #{tpu_custom_call.1} parent=11 // pred_check
          %p190 = pneg %p83
        $region18: #{tpu_custom_call.1} parent=11 // pred_check_branch
          %192 = sbr.rel (%p190) target = $region20
        $region19: #{tpu_custom_call.1} parent=11 // pred_region
          _
        $region20: #{tpu_custom_call.1} parent=11 // pred_fallthru
          _
        // Predicated region
        $region21: #{tpu_custom_call.1} parent=11 // pred_check
          %p193 = pneg %p104
        $region22: #{tpu_custom_call.1} parent=11 // pred_check_branch
          %195 = sbr.rel (%p193) target = $region24
        $region23: #{tpu_custom_call.1} parent=11 // pred_region
          _
        $region24: #{tpu_custom_call.1} parent=11 // pred_fallthru
          _
        // Predicated region
        $region25: #{tpu_custom_call.1} parent=11 // pred_check
          %p196 = pneg %p125
        $region26: #{tpu_custom_call.1} parent=11 // pred_check_branch
          %198 = sbr.rel (%p196) target = $region28
        $region27: #{tpu_custom_call.1} parent=11 // pred_region
          _
        $region28: #{tpu_custom_call.1} parent=11 // pred_fallthru
          _
        // Predicated region
        $region29: #{tpu_custom_call.1} parent=11 // pred_check
          %p199 = pneg %p146
        $region30: #{tpu_custom_call.1} parent=11 // pred_check_branch
          %201 = sbr.rel (%p199) target = $region32
        $region31: #{tpu_custom_call.1} parent=11 // pred_region
          _
        $region32: #{tpu_custom_call.1} parent=11 // pred_fallthru
          _
      $region12: #{tpu_custom_call.1} parent=5 // pred_fallthru
        _
      %p202 = scmp.lt.s32.totalorder %s15, 2
      // Predicated region
      $region33: #{tpu_custom_call.1} parent=5 // pred_check
        %p203 = pneg %p202
      $region34: #{tpu_custom_call.1} parent=5 // pred_check_branch
        %205 = sbr.rel (%p203) target = $region36
      $region35: #{tpu_custom_call.1} parent=5 // pred_region
        // Predicated region
        $region37: #{tpu_custom_call.1} parent=35 // pred_check
          %p206 = pneg %p35
        $region38: #{tpu_custom_call.1} parent=35 // pred_check_branch
          %208 = sbr.rel (%p206) target = $region40
        $region39: #{tpu_custom_call.1} parent=35 // pred_region
          %p209 = scmp.lt.s32.totalorder %s15, 1
          %s210 = scalar_select %p209, %s15, 1
          %s211 = smul.addr %s210, 8
          %s212 = scalar_lea.vmem %s0, %s211
        $region40: #{tpu_custom_call.1} parent=35 // pred_fallthru
          _
      $region36: #{tpu_custom_call.1} parent=5 // pred_fallthru
        _
      %p213 = scmp.le.s32.totalorder 1, %s15
      %p214 = scmp.lt.s32.totalorder %s15, 3
      %p215 = pnand %p213, %p214
      %p216 = pneg %p215
      // Predicated region
      $region41: #{tpu_custom_call.1} parent=5 // pred_check
        _
      $region42: #{tpu_custom_call.1} parent=5 // pred_check_branch
        %218 = sbr.rel (%p215) target = $region44
      $region43: #{tpu_custom_call.1} parent=5 // pred_region
        %s219 = ssub.s32 %s15, 1
        %p220 = scmp.lt.s32.totalorder %s20, 1
        %s221 = scalar_select %p220, %s20, 1
        %s222 = smul.addr %s221, 8
        %s223 = scalar_lea.vmem %s0, %s222
        %p224 = pneg %p41
        %p225 = pneg %p38
        %p226 = pneg %p62
        %p227 = pneg %p59
        %p228 = pneg %p83
        %p229 = pneg %p80
        %p230 = pneg %p104
        %p231 = pneg %p101
        %p232 = pneg %p125
        %p233 = pneg %p122
        %p234 = pneg %p146
        %p235 = pneg %p143
        %p236 = pneg %p172
        %p237 = pneg %p169
        %s238 = sand.u32 %s159, 1
        %s239 = scalar_lea.sflag [#allocation4], %s238
        %s240 = sand.u32 %s159, 1
        %s241 = smul.addr %s240, 8
        %s242 = scalar_lea.vmem [#allocation3], %s241
        %p243 = scmp.lt.s32.totalorder %s20, 1
        %s244 = scalar_select %p243, %s20, 1
        %s245 = smul.addr %s244, 8
        %s246 = scalar_lea.vmem %s0, %s245
        %v247 = vld [vmem:[%s246] sm:$0xff]
        %v248 = vld [vmem:[%s1] ss:$0 sm:$0xff]
        %v249 = vld [vmem:[%s1 + $0x1] ss:$0 sm:$0xff]
        %v250 = vld [vmem:[%s1 + $0x2] ss:$0 sm:$0xff]
        %v251 = vld [vmem:[%s1 + $0x3] ss:$0 sm:$0xff]
        %v252 = vld [vmem:[%s1 + $0x4] ss:$0 sm:$0xff]
        %s253 = scalar_lea.vmem %s1, 5
        %v254 = vld [vmem:[%s253] ss:$8 sm:$0x3]
        %v255 = vld [vmem:[%s1 + $0x6] ss:$0 sm:$0xff]
        %vm256 = vcmask 392192
        %v257 = vsel %vm256, %v247, 0.0
        %258 = vadd.xlane.f32.xlu0 %v257
        %v259 = vpop.xlane.xlu0 %258
        %v260 = vrcp.pop 48.0
        %v261 = vmul.f32 %v259, %v260
        %v262 = vsub.f32 %v247, %v261
        %v263 = vmul.f32 %v262, %v262
        %v264 = vsel %vm256, %v263, 0.0
        %265 = vadd.xlane.f32.xlu0 %v264
        %v266 = vpop.xlane.xlu0 %265
        %v267 = vmul.f32 %v266, %v260
        %v268 = vadd.f32 %v267, 1e-05
        %v269 = vrsqrt.pop %v268
        %v270 = vmul.f32 %v262, %v269
        %v271 = vmul.f32 %v270, %v248
        %v272 = vadd.f32 %v271, %v249
        %v273 = vld [vmem:[%s2] sm:$0xff]
        %v274 = vld [vmem:[%s2 + $0x8] sm:$0xff]
        %v275 = vld [vmem:[%s2 + $0x10] sm:$0xff]
        %v276 = vld [vmem:[%s2 + $0x18] sm:$0xff]
        %v277 = vld [vmem:[%s2 + $0x20] sm:$0xff]
        %v278 = vld [vmem:[%s2 + $0x28] sm:$0xff]
        %v279 = vld [vmem:[%s2 + $0x30] sm:$0xff]
        %v280 = vld [vmem:[%s2 + $0x38] sm:$0xff]
        %v281 = vld [vmem:[%s2 + $0x40] sm:$0xff]
        %v282 = vld [vmem:[%s2 + $0x48] sm:$0xff]
        %v283 = vld [vmem:[%s2 + $0x50] sm:$0xff]
        %v284 = vld [vmem:[%s2 + $0x58] sm:$0xff]
        %v286 = vsel %vm256, %v272, 0
        %288 = vmatprep.subr.mxu0 %v274
        %289 = vmatpush1.msra.mxu0 %v273
        %290 = vmatprep.subr.mxu0 %v276
        %291 = vmatpush1.msra.mxu0 %v275
        %292 = vmatprep.subr.mxu0 %v278
        %293 = vmatpush1.msra.mxu0 %v277
        %294 = vmatprep.subr.mxu0 %v280
        %295 = vmatpush1.msra.mxu0 %v279
        %296 = vmatprep.subr.mxu0 %v282
        %297 = vmatpush1.msra.mxu0 %v281
        %298 = vmatprep.subr.mxu0 %v284
        %299 = vmatpush1.msra.mxu0 %v283
        %300 = vmatprep.subr.mxu0 0.0
        %301 = vmatpush1.msra.mxu0 0.0
        %302 = vmatprep.subr.mxu0 0.0
        %303 = vmatpush1.msra.mxu0 0.0
        %304 = vmatprep.subr.mxu0 0.0
        %305 = vmatpush1.msra.mxu0 0.0
        %306 = vmatprep.subr.mxu0 0.0
        %307 = vmatpush1.msra.mxu0 0.0
        %308 = vmatprep.subr.mxu0 0.0
        %309 = vmatpush1.msra.mxu0 0.0
        %310 = vmatprep.subr.mxu0 0.0
        %311 = vmatpush1.msra.mxu0 0.0
        %312 = vmatprep.subr.mxu0 0.0
        %313 = vmatpush1.msra.mxu0 0.0
        %314 = vmatprep.subr.mxu0 0.0
        %315 = vmatpush1.msra.mxu0 0.0
        %316 = vmatprep.subr.mxu0 0.0
        %317 = vmatpush1.msra.mxu0 0.0
        %318 = vmatprep.subr.mxu0 0.0
        %319 = vmatpush1.msra.mxu0 0.0
        %320 = vmatprep.subr.mxu0 0.0
        %321 = vmatpush1.msra.mxu0 0.0
        %322 = vmatprep.subr.mxu0 0.0
        %323 = vmatpush1.msra.mxu0 0.0
        %324 = vmatprep.subr.mxu0 0.0
        %325 = vmatpush1.msra.mxu0 0.0
        %326 = vmatprep.subr.mxu0 0.0
        %327 = vmatpush1.msra.mxu0 0.0
        %328 = vmatprep.subr.mxu0 0.0
        %329 = vmatpush1.msra.mxu0 0.0
        %330 = vmatprep.subr.mxu0 0.0
        %331 = vmatpush1.msra.mxu0 0.0
        %332 = vmatprep.subr.mxu0 0.0
        %333 = vmatpush1.msra.mxu0 0.0
        %334 = vmatprep.subr.mxu0 0.0
        %335 = vmatpush1.msra.mxu0 0.0
        %336 = vmatprep.subr.mxu0 0.0
        %337 = vmatpush1.msra.mxu0 0.0
        %338 = vmatprep.subr.mxu0 0.0
        %339 = vmatpush1.msra.mxu0 0.0
        %340 = vmatprep.subr.mxu0 0.0
        %341 = vmatpush1.msra.mxu0 0.0
        %342 = vmatprep.subr.mxu0 0.0
        %343 = vmatpush1.msra.mxu0 0.0
        %344 = vmatprep.subr.mxu0 0.0
        %345 = vmatpush1.msra.mxu0 0.0
        %346 = vmatprep.subr.mxu0 0.0
        %347 = vmatpush1.msra.mxu0 0.0
        %348 = vmatprep.subr.mxu0 0.0
        %349 = vmatpush1.msra.mxu0 0.0
        %350 = vmatprep.subr.mxu0 0.0
        %351 = vmatpush1.msra.mxu0 0.0
        %352 = vmatprep.mubr.f32.mxu0 0.0
        %353 = vmatmul.mubr.f32.gmra.mrb[0].mxu0 %v286
        %v354 = vpop.f32.mrb[0].mxu0
        %v355 = vadd.f32 0.0, %v354
        %v356 = vpop.f32.mrb[0].mxu0
        %v357 = vadd.f32 0.0, %v356
        %358 = vdwg.mxu0
        %v359 = vlaneseq
        %v360 = vshrl.u32 %v359, 7
        %v361 = vlaneseq
        %v362 = vand.u32 %v361, 127
        %vm363 = vcmp.le.s32.totalorder %v362, %v360
        %v364 = vsel %vm363, 0.0, -1e+30
        %366 = vrot.lane.b32.xlu0 %v355, 80
        %v367 = vpop.permute.xlu0 %366
        %vm368 = vcmask 64512
        %v369 = vsel %vm368, %v355, 0
        %v371 = vsel %vm368, %v367, 0
        %373 = vmatprep.subr.mxu0 0.0
        %374 = vmatpush1.xpose.msra.mxu0 %v371
        %375 = vmatprep.subr.mxu0 0.0
        %376 = vmatpush1.xpose.msra.mxu0 0.0
        %377 = vmatprep.subr.mxu0 0.0
        %378 = vmatpush1.xpose.msra.mxu0 0.0
        %379 = vmatprep.subr.mxu0 0.0
        %380 = vmatpush1.xpose.msra.mxu0 0.0
        %381 = vmatprep.subr.mxu0 0.0
        %382 = vmatpush1.xpose.msra.mxu0 0.0
        %383 = vmatprep.subr.mxu0 0.0
        %384 = vmatpush1.xpose.msra.mxu0 0.0
        %385 = vmatprep.subr.mxu0 0.0
        %386 = vmatpush1.xpose.msra.mxu0 0.0
        %387 = vmatprep.subr.mxu0 0.0
        %388 = vmatpush1.xpose.msra.mxu0 0.0
        %389 = vmatprep.subr.mxu0 0.0
        %390 = vmatpush1.xpose.msra.mxu0 0.0
        %391 = vmatprep.subr.mxu0 0.0
        %392 = vmatpush1.xpose.msra.mxu0 0.0
        %393 = vmatprep.subr.mxu0 0.0
        %394 = vmatpush1.xpose.msra.mxu0 0.0
        %395 = vmatprep.subr.mxu0 0.0
        %396 = vmatpush1.xpose.msra.mxu0 0.0
        %397 = vmatprep.subr.mxu0 0.0
        %398 = vmatpush1.xpose.msra.mxu0 0.0
        %399 = vmatprep.subr.mxu0 0.0
        %400 = vmatpush1.xpose.msra.mxu0 0.0
        %401 = vmatprep.subr.mxu0 0.0
        %402 = vmatpush1.xpose.msra.mxu0 0.0
        %403 = vmatprep.subr.mxu0 0.0
        %404 = vmatpush1.xpose.msra.mxu0 0.0
        %405 = vmatprep.subr.mxu0 0.0
        %406 = vmatpush1.xpose.msra.mxu0 0.0
        %407 = vmatprep.subr.mxu0 0.0
        %408 = vmatpush1.xpose.msra.mxu0 0.0
        %409 = vmatprep.subr.mxu0 0.0
        %410 = vmatpush1.xpose.msra.mxu0 0.0
        %411 = vmatprep.subr.mxu0 0.0
        %412 = vmatpush1.xpose.msra.mxu0 0.0
        %413 = vmatprep.subr.mxu0 0.0
        %414 = vmatpush1.xpose.msra.mxu0 0.0
        %415 = vmatprep.subr.mxu0 0.0
        %416 = vmatpush1.xpose.msra.mxu0 0.0
        %417 = vmatprep.subr.mxu0 0.0
        %418 = vmatpush1.xpose.msra.mxu0 0.0
        %419 = vmatprep.subr.mxu0 0.0
        %420 = vmatpush1.xpose.msra.mxu0 0.0
        %421 = vmatprep.subr.mxu0 0.0
        %422 = vmatpush1.xpose.msra.mxu0 0.0
        %423 = vmatprep.subr.mxu0 0.0
        %424 = vmatpush1.xpose.msra.mxu0 0.0
        %425 = vmatprep.subr.mxu0 0.0
        %426 = vmatpush1.xpose.msra.mxu0 0.0
        %427 = vmatprep.subr.mxu0 0.0
        %428 = vmatpush1.xpose.msra.mxu0 0.0
        %429 = vmatprep.subr.mxu0 0.0
        %430 = vmatpush1.xpose.msra.mxu0 0.0
        %431 = vmatprep.subr.mxu0 0.0
        %432 = vmatpush1.xpose.msra.mxu0 0.0
        %433 = vmatprep.subr.mxu0 0.0
        %434 = vmatpush1.xpose.msra.mxu0 0.0
        %435 = vmatprep.subr.mxu0 0.0
        %436 = vmatpush1.xpose.msra.mxu0 0.0
        %437 = vmatprep.mubr.f32.mxu0 0.0
        %438 = vmatmul.mubr.f32.gmra.mrb[0].mxu0 %v369
        %v439 = vpop.f32.mrb[0].mxu0
        %v440 = vadd.f32 %v364, %v439
        %v441 = vpop.f32.mrb[0].mxu0
        %442 = vdwg.mxu0
        %v443 = vsel %vm368, %v440, -inf
        %444 = vmax.xlane.f32.xlu0 %v443
        %v445 = vpop.xlane.xlu0 %444
        %v446 = vsub.f32 %v440, %v445
        %v447 = vmul.f32 %v446, 1.442695
        %v448 = vpow.pop %v447
        %v449 = vsel %vm368, %v448, 0.0
        %450 = vadd.xlane.f32.xlu0 %v449
        %v451 = vpop.xlane.xlu0 %450
        %v452 = vrcp.pop %v451
        %v453 = vmul.f32 %v448, %v452
        %454 = vrot.lane.b32.xlu0 %v355, 32
        %v455 = vpop.permute.xlu0 %454
        %v458 = vsel %vm368, %v453, 0
        %460 = vmatprep.subr.mxu0 0.0
        %461 = vmatpush1.msra.mxu0 %v455
        %462 = vmatprep.subr.mxu0 0.0
        %463 = vmatpush1.msra.mxu0 0.0
        %464 = vmatprep.subr.mxu0 0.0
        %465 = vmatpush1.msra.mxu0 0.0
        %466 = vmatprep.subr.mxu0 0.0
        %467 = vmatpush1.msra.mxu0 0.0
        %468 = vmatprep.subr.mxu0 0.0
        %469 = vmatpush1.msra.mxu0 0.0
        %470 = vmatprep.subr.mxu0 0.0
        %471 = vmatpush1.msra.mxu0 0.0
        %472 = vmatprep.subr.mxu0 0.0
        %473 = vmatpush1.msra.mxu0 0.0
        %474 = vmatprep.subr.mxu0 0.0
        %475 = vmatpush1.msra.mxu0 0.0
        %476 = vmatprep.subr.mxu0 0.0
        %477 = vmatpush1.msra.mxu0 0.0
        %478 = vmatprep.subr.mxu0 0.0
        %479 = vmatpush1.msra.mxu0 0.0
        %480 = vmatprep.subr.mxu0 0.0
        %481 = vmatpush1.msra.mxu0 0.0
        %482 = vmatprep.subr.mxu0 0.0
        %483 = vmatpush1.msra.mxu0 0.0
        %484 = vmatprep.subr.mxu0 0.0
        %485 = vmatpush1.msra.mxu0 0.0
        %486 = vmatprep.subr.mxu0 0.0
        %487 = vmatpush1.msra.mxu0 0.0
        %488 = vmatprep.subr.mxu0 0.0
        %489 = vmatpush1.msra.mxu0 0.0
        %490 = vmatprep.subr.mxu0 0.0
        %491 = vmatpush1.msra.mxu0 0.0
        %492 = vmatprep.subr.mxu0 0.0
        %493 = vmatpush1.msra.mxu0 0.0
        %494 = vmatprep.subr.mxu0 0.0
        %495 = vmatpush1.msra.mxu0 0.0
        %496 = vmatprep.subr.mxu0 0.0
        %497 = vmatpush1.msra.mxu0 0.0
        %498 = vmatprep.subr.mxu0 0.0
        %499 = vmatpush1.msra.mxu0 0.0
        %500 = vmatprep.subr.mxu0 0.0
        %501 = vmatpush1.msra.mxu0 0.0
        %502 = vmatprep.subr.mxu0 0.0
        %503 = vmatpush1.msra.mxu0 0.0
        %504 = vmatprep.subr.mxu0 0.0
        %505 = vmatpush1.msra.mxu0 0.0
        %506 = vmatprep.subr.mxu0 0.0
        %507 = vmatpush1.msra.mxu0 0.0
        %508 = vmatprep.subr.mxu0 0.0
        %509 = vmatpush1.msra.mxu0 0.0
        %510 = vmatprep.subr.mxu0 0.0
        %511 = vmatpush1.msra.mxu0 0.0
        %512 = vmatprep.subr.mxu0 0.0
        %513 = vmatpush1.msra.mxu0 0.0
        %514 = vmatprep.subr.mxu0 0.0
        %515 = vmatpush1.msra.mxu0 0.0
        %516 = vmatprep.subr.mxu0 0.0
        %517 = vmatpush1.msra.mxu0 0.0
        %518 = vmatprep.subr.mxu0 0.0
        %519 = vmatpush1.msra.mxu0 0.0
        %520 = vmatprep.subr.mxu0 0.0
        %521 = vmatpush1.msra.mxu0 0.0
        %522 = vmatprep.subr.mxu0 0.0
        %523 = vmatpush1.msra.mxu0 0.0
        %524 = vmatprep.mubr.f32.mxu0 0.0
        %525 = vmatmul.mubr.f32.gmra.mrb[0].mxu0 %v458
        %v526 = vpop.f32.mrb[0].mxu0
        %v527 = vadd.f32 0.0, %v526
        %v528 = vpop.f32.mrb[0].mxu0
        %529 = vdwg.mxu0
        %530 = vst.msk [vmem:[#allocation2] sm:$0xff] %vm368, %v527
        %531 = vrot.lane.b32.xlu0 %v355, 120
        %v532 = vpop.permute.xlu0 %531
        %533 = vrot.lane.b32.xlu0 %v355, 72
        %v534 = vpop.permute.xlu0 %533
        %v535 = vsel %vm368, %v532, 0
        %v537 = vsel %vm368, %v534, 0
        %539 = vmatprep.subr.mxu0 0.0
        %540 = vmatpush1.xpose.msra.mxu0 %v537
        %541 = vmatprep.subr.mxu0 0.0
        %542 = vmatpush1.xpose.msra.mxu0 0.0
        %543 = vmatprep.subr.mxu0 0.0
        %544 = vmatpush1.xpose.msra.mxu0 0.0
        %545 = vmatprep.subr.mxu0 0.0
        %546 = vmatpush1.xpose.msra.mxu0 0.0
        %547 = vmatprep.subr.mxu0 0.0
        %548 = vmatpush1.xpose.msra.mxu0 0.0
        %549 = vmatprep.subr.mxu0 0.0
        %550 = vmatpush1.xpose.msra.mxu0 0.0
        %551 = vmatprep.subr.mxu0 0.0
        %552 = vmatpush1.xpose.msra.mxu0 0.0
        %553 = vmatprep.subr.mxu0 0.0
        %554 = vmatpush1.xpose.msra.mxu0 0.0
        %555 = vmatprep.subr.mxu0 0.0
        %556 = vmatpush1.xpose.msra.mxu0 0.0
        %557 = vmatprep.subr.mxu0 0.0
        %558 = vmatpush1.xpose.msra.mxu0 0.0
        %559 = vmatprep.subr.mxu0 0.0
        %560 = vmatpush1.xpose.msra.mxu0 0.0
        %561 = vmatprep.subr.mxu0 0.0
        %562 = vmatpush1.xpose.msra.mxu0 0.0
        %563 = vmatprep.subr.mxu0 0.0
        %564 = vmatpush1.xpose.msra.mxu0 0.0
        %565 = vmatprep.subr.mxu0 0.0
        %566 = vmatpush1.xpose.msra.mxu0 0.0
        %567 = vmatprep.subr.mxu0 0.0
        %568 = vmatpush1.xpose.msra.mxu0 0.0
        %569 = vmatprep.subr.mxu0 0.0
        %570 = vmatpush1.xpose.msra.mxu0 0.0
        %571 = vmatprep.subr.mxu0 0.0
        %572 = vmatpush1.xpose.msra.mxu0 0.0
        %573 = vmatprep.subr.mxu0 0.0
        %574 = vmatpush1.xpose.msra.mxu0 0.0
        %575 = vmatprep.subr.mxu0 0.0
        %576 = vmatpush1.xpose.msra.mxu0 0.0
        %577 = vmatprep.subr.mxu0 0.0
        %578 = vmatpush1.xpose.msra.mxu0 0.0
        %579 = vmatprep.subr.mxu0 0.0
        %580 = vmatpush1.xpose.msra.mxu0 0.0
        %581 = vmatprep.subr.mxu0 0.0
        %582 = vmatpush1.xpose.msra.mxu0 0.0
        %583 = vmatprep.subr.mxu0 0.0
        %584 = vmatpush1.xpose.msra.mxu0 0.0
        %585 = vmatprep.subr.mxu0 0.0
        %586 = vmatpush1.xpose.msra.mxu0 0.0
        %587 = vmatprep.subr.mxu0 0.0
        %588 = vmatpush1.xpose.msra.mxu0 0.0
        %589 = vmatprep.subr.mxu0 0.0
        %590 = vmatpush1.xpose.msra.mxu0 0.0
        %591 = vmatprep.subr.mxu0 0.0
        %592 = vmatpush1.xpose.msra.mxu0 0.0
        %593 = vmatprep.subr.mxu0 0.0
        %594 = vmatpush1.xpose.msra.mxu0 0.0
        %595 = vmatprep.subr.mxu0 0.0
        %596 = vmatpush1.xpose.msra.mxu0 0.0
        %597 = vmatprep.subr.mxu0 0.0
        %598 = vmatpush1.xpose.msra.mxu0 0.0
        %599 = vmatprep.subr.mxu0 0.0
        %600 = vmatpush1.xpose.msra.mxu0 0.0
        %601 = vmatprep.subr.mxu0 0.0
        %602 = vmatpush1.xpose.msra.mxu0 0.0
        %603 = vmatprep.mubr.f32.mxu0 0.0
        %604 = vmatmul.mubr.f32.gmra.mrb[0].mxu0 %v535
        %v605 = vpop.f32.mrb[0].mxu0
        %v606 = vadd.f32 %v364, %v605
        %v607 = vpop.f32.mrb[0].mxu0
        %608 = vdwg.mxu0
        %v609 = vsel %vm368, %v606, -inf
        %610 = vmax.xlane.f32.xlu0 %v609
        %v611 = vpop.xlane.xlu0 %610
        %v612 = vsub.f32 %v606, %v611
        %v613 = vmul.f32 %v612, 1.442695
        %v614 = vpow.pop %v613
        %v615 = vsel %vm368, %v614, 0.0
        %616 = vadd.xlane.f32.xlu0 %v615
        %v617 = vpop.xlane.xlu0 %616
        %v618 = vrcp.pop %v617
        %v619 = vmul.f32 %v614, %v618
        %620 = vrot.lane.b32.xlu0 %v355, 24
        %v621 = vpop.permute.xlu0 %620
        %v624 = vsel %vm368, %v619, 0
        %626 = vmatprep.subr.mxu0 0.0
        %627 = vmatpush1.msra.mxu0 %v621
        %628 = vmatprep.subr.mxu0 0.0
        %629 = vmatpush1.msra.mxu0 0.0
        %630 = vmatprep.subr.mxu0 0.0
        %631 = vmatpush1.msra.mxu0 0.0
        %632 = vmatprep.subr.mxu0 0.0
        %633 = vmatpush1.msra.mxu0 0.0
        %634 = vmatprep.subr.mxu0 0.0
        %635 = vmatpush1.msra.mxu0 0.0
        %636 = vmatprep.subr.mxu0 0.0
        %637 = vmatpush1.msra.mxu0 0.0
        %638 = vmatprep.subr.mxu0 0.0
        %639 = vmatpush1.msra.mxu0 0.0
        %640 = vmatprep.subr.mxu0 0.0
        %641 = vmatpush1.msra.mxu0 0.0
        %642 = vmatprep.subr.mxu0 0.0
        %643 = vmatpush1.msra.mxu0 0.0
        %644 = vmatprep.subr.mxu0 0.0
        %645 = vmatpush1.msra.mxu0 0.0
        %646 = vmatprep.subr.mxu0 0.0
        %647 = vmatpush1.msra.mxu0 0.0
        %648 = vmatprep.subr.mxu0 0.0
        %649 = vmatpush1.msra.mxu0 0.0
        %650 = vmatprep.subr.mxu0 0.0
        %651 = vmatpush1.msra.mxu0 0.0
        %652 = vmatprep.subr.mxu0 0.0
        %653 = vmatpush1.msra.mxu0 0.0
        %654 = vmatprep.subr.mxu0 0.0
        %655 = vmatpush1.msra.mxu0 0.0
        %656 = vmatprep.subr.mxu0 0.0
        %657 = vmatpush1.msra.mxu0 0.0
        %658 = vmatprep.subr.mxu0 0.0
        %659 = vmatpush1.msra.mxu0 0.0
        %660 = vmatprep.subr.mxu0 0.0
        %661 = vmatpush1.msra.mxu0 0.0
        %662 = vmatprep.subr.mxu0 0.0
        %663 = vmatpush1.msra.mxu0 0.0
        %664 = vmatprep.subr.mxu0 0.0
        %665 = vmatpush1.msra.mxu0 0.0
        %666 = vmatprep.subr.mxu0 0.0
        %667 = vmatpush1.msra.mxu0 0.0
        %668 = vmatprep.subr.mxu0 0.0
        %669 = vmatpush1.msra.mxu0 0.0
        %670 = vmatprep.subr.mxu0 0.0
        %671 = vmatpush1.msra.mxu0 0.0
        %672 = vmatprep.subr.mxu0 0.0
        %673 = vmatpush1.msra.mxu0 0.0
        %674 = vmatprep.subr.mxu0 0.0
        %675 = vmatpush1.msra.mxu0 0.0
        %676 = vmatprep.subr.mxu0 0.0
        %677 = vmatpush1.msra.mxu0 0.0
        %678 = vmatprep.subr.mxu0 0.0
        %679 = vmatpush1.msra.mxu0 0.0
        %680 = vmatprep.subr.mxu0 0.0
        %681 = vmatpush1.msra.mxu0 0.0
        %682 = vmatprep.subr.mxu0 0.0
        %683 = vmatpush1.msra.mxu0 0.0
        %684 = vmatprep.subr.mxu0 0.0
        %685 = vmatpush1.msra.mxu0 0.0
        %686 = vmatprep.subr.mxu0 0.0
        %687 = vmatpush1.msra.mxu0 0.0
        %688 = vmatprep.subr.mxu0 0.0
        %689 = vmatpush1.msra.mxu0 0.0
        %690 = vmatprep.mubr.f32.mxu0 0.0
        %691 = vmatmul.mubr.f32.gmra.mrb[0].mxu0 %v624
        %v692 = vpop.f32.mrb[0].mxu0
        %v693 = vadd.f32 0.0, %v692
        %v694 = vpop.f32.mrb[0].mxu0
        %695 = vdwg.mxu0
        %697 = vrot.lane.b32.xlu0 %v693, 8
        %v698 = vpop.permute.xlu0 %697
        %vm700 = vcmask 130112
        %701 = vst.msk [vmem:[#allocation2] sm:$0xff] %vm700, %v698
        %702 = vrot.lane.b32.xlu0 %v355, 112
        %v703 = vpop.permute.xlu0 %702
        %704 = vrot.lane.b32.xlu0 %v355, 64
        %v705 = vpop.permute.xlu0 %704
        %v706 = vsel %vm368, %v703, 0
        %v708 = vsel %vm368, %v705, 0
        %710 = vmatprep.subr.mxu0 0.0
        %711 = vmatpush1.xpose.msra.mxu0 %v708
        %712 = vmatprep.subr.mxu0 0.0
        %713 = vmatpush1.xpose.msra.mxu0 0.0
        %714 = vmatprep.subr.mxu0 0.0
        %715 = vmatpush1.xpose.msra.mxu0 0.0
        %716 = vmatprep.subr.mxu0 0.0
        %717 = vmatpush1.xpose.msra.mxu0 0.0
        %718 = vmatprep.subr.mxu0 0.0
        %719 = vmatpush1.xpose.msra.mxu0 0.0
        %720 = vmatprep.subr.mxu0 0.0
        %721 = vmatpush1.xpose.msra.mxu0 0.0
        %722 = vmatprep.subr.mxu0 0.0
        %723 = vmatpush1.xpose.msra.mxu0 0.0
        %724 = vmatprep.subr.mxu0 0.0
        %725 = vmatpush1.xpose.msra.mxu0 0.0
        %726 = vmatprep.subr.mxu0 0.0
        %727 = vmatpush1.xpose.msra.mxu0 0.0
        %728 = vmatprep.subr.mxu0 0.0
        %729 = vmatpush1.xpose.msra.mxu0 0.0
        %730 = vmatprep.subr.mxu0 0.0
        %731 = vmatpush1.xpose.msra.mxu0 0.0
        %732 = vmatprep.subr.mxu0 0.0
        %733 = vmatpush1.xpose.msra.mxu0 0.0
        %734 = vmatprep.subr.mxu0 0.0
        %735 = vmatpush1.xpose.msra.mxu0 0.0
        %736 = vmatprep.subr.mxu0 0.0
        %737 = vmatpush1.xpose.msra.mxu0 0.0
        %738 = vmatprep.subr.mxu0 0.0
        %739 = vmatpush1.xpose.msra.mxu0 0.0
        %740 = vmatprep.subr.mxu0 0.0
        %741 = vmatpush1.xpose.msra.mxu0 0.0
        %742 = vmatprep.subr.mxu0 0.0
        %743 = vmatpush1.xpose.msra.mxu0 0.0
        %744 = vmatprep.subr.mxu0 0.0
        %745 = vmatpush1.xpose.msra.mxu0 0.0
        %746 = vmatprep.subr.mxu0 0.0
        %747 = vmatpush1.xpose.msra.mxu0 0.0
        %748 = vmatprep.subr.mxu0 0.0
        %749 = vmatpush1.xpose.msra.mxu0 0.0
        %750 = vmatprep.subr.mxu0 0.0
        %751 = vmatpush1.xpose.msra.mxu0 0.0
        %752 = vmatprep.subr.mxu0 0.0
        %753 = vmatpush1.xpose.msra.mxu0 0.0
        %754 = vmatprep.subr.mxu0 0.0
        %755 = vmatpush1.xpose.msra.mxu0 0.0
        %756 = vmatprep.subr.mxu0 0.0
        %757 = vmatpush1.xpose.msra.mxu0 0.0
        %758 = vmatprep.subr.mxu0 0.0
        %759 = vmatpush1.xpose.msra.mxu0 0.0
        %760 = vmatprep.subr.mxu0 0.0
        %761 = vmatpush1.xpose.msra.mxu0 0.0
        %762 = vmatprep.subr.mxu0 0.0
        %763 = vmatpush1.xpose.msra.mxu0 0.0
        %764 = vmatprep.subr.mxu0 0.0
        %765 = vmatpush1.xpose.msra.mxu0 0.0
        %766 = vmatprep.subr.mxu0 0.0
        %767 = vmatpush1.xpose.msra.mxu0 0.0
        %768 = vmatprep.subr.mxu0 0.0
        %769 = vmatpush1.xpose.msra.mxu0 0.0
        %770 = vmatprep.subr.mxu0 0.0
        %771 = vmatpush1.xpose.msra.mxu0 0.0
        %772 = vmatprep.subr.mxu0 0.0
        %773 = vmatpush1.xpose.msra.mxu0 0.0
        %774 = vmatprep.mubr.f32.mxu0 0.0
        %775 = vmatmul.mubr.f32.gmra.mrb[0].mxu0 %v706
        %v776 = vpop.f32.mrb[0].mxu0
        %v777 = vadd.f32 %v364, %v776
        %v778 = vpop.f32.mrb[0].mxu0
        %779 = vdwg.mxu0
        %v780 = vsel %vm368, %v777, -inf
        %781 = vmax.xlane.f32.xlu0 %v780
        %v782 = vpop.xlane.xlu0 %781
        %v783 = vsub.f32 %v777, %v782
        %v784 = vmul.f32 %v783, 1.442695
        %v785 = vpow.pop %v784
        %v786 = vsel %vm368, %v785, 0.0
        %787 = vadd.xlane.f32.xlu0 %v786
        %v788 = vpop.xlane.xlu0 %787
        %v789 = vrcp.pop %v788
        %v790 = vmul.f32 %v785, %v789
        %791 = vrot.lane.b32.xlu0 %v355, 16
        %v792 = vpop.permute.xlu0 %791
        %v795 = vsel %vm368, %v790, 0
        %797 = vmatprep.subr.mxu0 0.0
        %798 = vmatpush1.msra.mxu0 %v792
        %799 = vmatprep.subr.mxu0 0.0
        %800 = vmatpush1.msra.mxu0 0.0
        %801 = vmatprep.subr.mxu0 0.0
        %802 = vmatpush1.msra.mxu0 0.0
        %803 = vmatprep.subr.mxu0 0.0
        %804 = vmatpush1.msra.mxu0 0.0
        %805 = vmatprep.subr.mxu0 0.0
        %806 = vmatpush1.msra.mxu0 0.0
        %807 = vmatprep.subr.mxu0 0.0
        %808 = vmatpush1.msra.mxu0 0.0
        %809 = vmatprep.subr.mxu0 0.0
        %810 = vmatpush1.msra.mxu0 0.0
        %811 = vmatprep.subr.mxu0 0.0
        %812 = vmatpush1.msra.mxu0 0.0
        %813 = vmatprep.subr.mxu0 0.0
        %814 = vmatpush1.msra.mxu0 0.0
        %815 = vmatprep.subr.mxu0 0.0
        %816 = vmatpush1.msra.mxu0 0.0
        %817 = vmatprep.subr.mxu0 0.0
        %818 = vmatpush1.msra.mxu0 0.0
        %819 = vmatprep.subr.mxu0 0.0
        %820 = vmatpush1.msra.mxu0 0.0
        %821 = vmatprep.subr.mxu0 0.0
        %822 = vmatpush1.msra.mxu0 0.0
        %823 = vmatprep.subr.mxu0 0.0
        %824 = vmatpush1.msra.mxu0 0.0
        %825 = vmatprep.subr.mxu0 0.0
        %826 = vmatpush1.msra.mxu0 0.0
        %827 = vmatprep.subr.mxu0 0.0
        %828 = vmatpush1.msra.mxu0 0.0
        %829 = vmatprep.subr.mxu0 0.0
        %830 = vmatpush1.msra.mxu0 0.0
        %831 = vmatprep.subr.mxu0 0.0
        %832 = vmatpush1.msra.mxu0 0.0
        %833 = vmatprep.subr.mxu0 0.0
        %834 = vmatpush1.msra.mxu0 0.0
        %835 = vmatprep.subr.mxu0 0.0
        %836 = vmatpush1.msra.mxu0 0.0
        %837 = vmatprep.subr.mxu0 0.0
        %838 = vmatpush1.msra.mxu0 0.0
        %839 = vmatprep.subr.mxu0 0.0
        %840 = vmatpush1.msra.mxu0 0.0
        %841 = vmatprep.subr.mxu0 0.0
        %842 = vmatpush1.msra.mxu0 0.0
        %843 = vmatprep.subr.mxu0 0.0
        %844 = vmatpush1.msra.mxu0 0.0
        %845 = vmatprep.subr.mxu0 0.0
        %846 = vmatpush1.msra.mxu0 0.0
        %847 = vmatprep.subr.mxu0 0.0
        %848 = vmatpush1.msra.mxu0 0.0
        %849 = vmatprep.subr.mxu0 0.0
        %850 = vmatpush1.msra.mxu0 0.0
        %851 = vmatprep.subr.mxu0 0.0
        %852 = vmatpush1.msra.mxu0 0.0
        %853 = vmatprep.subr.mxu0 0.0
        %854 = vmatpush1.msra.mxu0 0.0
        %855 = vmatprep.subr.mxu0 0.0
        %856 = vmatpush1.msra.mxu0 0.0
        %857 = vmatprep.subr.mxu0 0.0
        %858 = vmatpush1.msra.mxu0 0.0
        %859 = vmatprep.subr.mxu0 0.0
        %860 = vmatpush1.msra.mxu0 0.0
        %861 = vmatprep.mubr.f32.mxu0 0.0
        %862 = vmatmul.mubr.f32.gmra.mrb[0].mxu0 %v795
        %v863 = vpop.f32.mrb[0].mxu0
        %v864 = vadd.f32 0.0, %v863
        %v865 = vpop.f32.mrb[0].mxu0
        %866 = vdwg.mxu0
        %868 = vrot.lane.b32.xlu0 %v864, 16
        %v869 = vpop.permute.xlu0 %868
        %vm871 = vcmask 195712
        %872 = vst.msk [vmem:[#allocation2] sm:$0xff] %vm871, %v869
        %873 = vrot.lane.b32.xlu0 %v355, 104
        %v874 = vpop.permute.xlu0 %873
        %875 = vrot.lane.b32.xlu0 %v355, 56
        %v876 = vpop.permute.xlu0 %875
        %v877 = vsel %vm368, %v874, 0
        %v879 = vsel %vm368, %v876, 0
        %881 = vmatprep.subr.mxu0 0.0
        %882 = vmatpush1.xpose.msra.mxu0 %v879
        %883 = vmatprep.subr.mxu0 0.0
        %884 = vmatpush1.xpose.msra.mxu0 0.0
        %885 = vmatprep.subr.mxu0 0.0
        %886 = vmatpush1.xpose.msra.mxu0 0.0
        %887 = vmatprep.subr.mxu0 0.0
        %888 = vmatpush1.xpose.msra.mxu0 0.0
        %889 = vmatprep.subr.mxu0 0.0
        %890 = vmatpush1.xpose.msra.mxu0 0.0
        %891 = vmatprep.subr.mxu0 0.0
        %892 = vmatpush1.xpose.msra.mxu0 0.0
        %893 = vmatprep.subr.mxu0 0.0
        %894 = vmatpush1.xpose.msra.mxu0 0.0
        %895 = vmatprep.subr.mxu0 0.0
        %896 = vmatpush1.xpose.msra.mxu0 0.0
        %897 = vmatprep.subr.mxu0 0.0
        %898 = vmatpush1.xpose.msra.mxu0 0.0
        %899 = vmatprep.subr.mxu0 0.0
        %900 = vmatpush1.xpose.msra.mxu0 0.0
        %901 = vmatprep.subr.mxu0 0.0
        %902 = vmatpush1.xpose.msra.mxu0 0.0
        %903 = vmatprep.subr.mxu0 0.0
        %904 = vmatpush1.xpose.msra.mxu0 0.0
        %905 = vmatprep.subr.mxu0 0.0
        %906 = vmatpush1.xpose.msra.mxu0 0.0
        %907 = vmatprep.subr.mxu0 0.0
        %908 = vmatpush1.xpose.msra.mxu0 0.0
        %909 = vmatprep.subr.mxu0 0.0
        %910 = vmatpush1.xpose.msra.mxu0 0.0
        %911 = vmatprep.subr.mxu0 0.0
        %912 = vmatpush1.xpose.msra.mxu0 0.0
        %913 = vmatprep.subr.mxu0 0.0
        %914 = vmatpush1.xpose.msra.mxu0 0.0
        %915 = vmatprep.subr.mxu0 0.0
        %916 = vmatpush1.xpose.msra.mxu0 0.0
        %917 = vmatprep.subr.mxu0 0.0
        %918 = vmatpush1.xpose.msra.mxu0 0.0
        %919 = vmatprep.subr.mxu0 0.0
        %920 = vmatpush1.xpose.msra.mxu0 0.0
        %921 = vmatprep.subr.mxu0 0.0
        %922 = vmatpush1.xpose.msra.mxu0 0.0
        %923 = vmatprep.subr.mxu0 0.0
        %924 = vmatpush1.xpose.msra.mxu0 0.0
        %925 = vmatprep.subr.mxu0 0.0
        %926 = vmatpush1.xpose.msra.mxu0 0.0
        %927 = vmatprep.subr.mxu0 0.0
        %928 = vmatpush1.xpose.msra.mxu0 0.0
        %929 = vmatprep.subr.mxu0 0.0
        %930 = vmatpush1.xpose.msra.mxu0 0.0
        %931 = vmatprep.subr.mxu0 0.0
        %932 = vmatpush1.xpose.msra.mxu0 0.0
        %933 = vmatprep.subr.mxu0 0.0
        %934 = vmatpush1.xpose.msra.mxu0 0.0
        %935 = vmatprep.subr.mxu0 0.0
        %936 = vmatpush1.xpose.msra.mxu0 0.0
        %937 = vmatprep.subr.mxu0 0.0
        %938 = vmatpush1.xpose.msra.mxu0 0.0
        %939 = vmatprep.subr.mxu0 0.0
        %940 = vmatpush1.xpose.msra.mxu0 0.0
        %941 = vmatprep.subr.mxu0 0.0
        %942 = vmatpush1.xpose.msra.mxu0 0.0
        %943 = vmatprep.subr.mxu0 0.0
        %944 = vmatpush1.xpose.msra.mxu0 0.0
        %945 = vmatprep.mubr.f32.mxu0 0.0
        %946 = vmatmul.mubr.f32.gmra.mrb[0].mxu0 %v877
        %v947 = vpop.f32.mrb[0].mxu0
        %v948 = vadd.f32 %v364, %v947
        %v949 = vpop.f32.mrb[0].mxu0
        %950 = vdwg.mxu0
        %v951 = vsel %vm368, %v948, -inf
        %952 = vmax.xlane.f32.xlu0 %v951
        %v953 = vpop.xlane.xlu0 %952
        %v954 = vsub.f32 %v948, %v953
        %v955 = vmul.f32 %v954, 1.442695
        %v956 = vpow.pop %v955
        %v957 = vsel %vm368, %v956, 0.0
        %958 = vadd.xlane.f32.xlu0 %v957
        %v959 = vpop.xlane.xlu0 %958
        %v960 = vrcp.pop %v959
        %v961 = vmul.f32 %v956, %v960
        %962 = vrot.lane.b32.xlu0 %v355, 8
        %v963 = vpop.permute.xlu0 %962
        %v966 = vsel %vm368, %v961, 0
        %968 = vmatprep.subr.mxu0 0.0
        %969 = vmatpush1.msra.mxu0 %v963
        %970 = vmatprep.subr.mxu0 0.0
        %971 = vmatpush1.msra.mxu0 0.0
        %972 = vmatprep.subr.mxu0 0.0
        %973 = vmatpush1.msra.mxu0 0.0
        %974 = vmatprep.subr.mxu0 0.0
        %975 = vmatpush1.msra.mxu0 0.0
        %976 = vmatprep.subr.mxu0 0.0
        %977 = vmatpush1.msra.mxu0 0.0
        %978 = vmatprep.subr.mxu0 0.0
        %979 = vmatpush1.msra.mxu0 0.0
        %980 = vmatprep.subr.mxu0 0.0
        %981 = vmatpush1.msra.mxu0 0.0
        %982 = vmatprep.subr.mxu0 0.0
        %983 = vmatpush1.msra.mxu0 0.0
        %984 = vmatprep.subr.mxu0 0.0
        %985 = vmatpush1.msra.mxu0 0.0
        %986 = vmatprep.subr.mxu0 0.0
        %987 = vmatpush1.msra.mxu0 0.0
        %988 = vmatprep.subr.mxu0 0.0
        %989 = vmatpush1.msra.mxu0 0.0
        %990 = vmatprep.subr.mxu0 0.0
        %991 = vmatpush1.msra.mxu0 0.0
        %992 = vmatprep.subr.mxu0 0.0
        %993 = vmatpush1.msra.mxu0 0.0
        %994 = vmatprep.subr.mxu0 0.0
        %995 = vmatpush1.msra.mxu0 0.0
        %996 = vmatprep.subr.mxu0 0.0
        %997 = vmatpush1.msra.mxu0 0.0
        %998 = vmatprep.subr.mxu0 0.0
        %999 = vmatpush1.msra.mxu0 0.0
        %1000 = vmatprep.subr.mxu0 0.0
        %1001 = vmatpush1.msra.mxu0 0.0
        %1002 = vmatprep.subr.mxu0 0.0
        %1003 = vmatpush1.msra.mxu0 0.0
        %1004 = vmatprep.subr.mxu0 0.0
        %1005 = vmatpush1.msra.mxu0 0.0
        %1006 = vmatprep.subr.mxu0 0.0
        %1007 = vmatpush1.msra.mxu0 0.0
        %1008 = vmatprep.subr.mxu0 0.0
        %1009 = vmatpush1.msra.mxu0 0.0
        %1010 = vmatprep.subr.mxu0 0.0
        %1011 = vmatpush1.msra.mxu0 0.0
        %1012 = vmatprep.subr.mxu0 0.0
        %1013 = vmatpush1.msra.mxu0 0.0
        %1014 = vmatprep.subr.mxu0 0.0
        %1015 = vmatpush1.msra.mxu0 0.0
        %1016 = vmatprep.subr.mxu0 0.0
        %1017 = vmatpush1.msra.mxu0 0.0
        %1018 = vmatprep.subr.mxu0 0.0
        %1019 = vmatpush1.msra.mxu0 0.0
        %1020 = vmatprep.subr.mxu0 0.0
        %1021 = vmatpush1.msra.mxu0 0.0
        %1022 = vmatprep.subr.mxu0 0.0
        %1023 = vmatpush1.msra.mxu0 0.0
        %1024 = vmatprep.subr.mxu0 0.0
        %1025 = vmatpush1.msra.mxu0 0.0
        %1026 = vmatprep.subr.mxu0 0.0
        %1027 = vmatpush1.msra.mxu0 0.0
        %1028 = vmatprep.subr.mxu0 0.0
        %1029 = vmatpush1.msra.mxu0 0.0
        %1030 = vmatprep.subr.mxu0 0.0
        %1031 = vmatpush1.msra.mxu0 0.0
        %1032 = vmatprep.mubr.f32.mxu0 0.0
        %1033 = vmatmul.mubr.f32.gmra.mrb[0].mxu0 %v966
        %v1034 = vpop.f32.mrb[0].mxu0
        %v1035 = vadd.f32 0.0, %v1034
        %v1036 = vpop.f32.mrb[0].mxu0
        %1037 = vdwg.mxu0
        %1039 = vrot.lane.b32.xlu0 %v1035, 24
        %v1040 = vpop.permute.xlu0 %1039
        %vm1042 = vcmask 261312
        %1043 = vst.msk [vmem:[#allocation2] sm:$0xff] %vm1042, %v1040
        %1044 = vrot.lane.b32.xlu0 %v355, 96
        %v1045 = vpop.permute.xlu0 %1044
        %1046 = vrot.lane.b32.xlu0 %v355, 48
        %v1047 = vpop.permute.xlu0 %1046
        %v1048 = vsel %vm368, %v1045, 0
        %v1050 = vsel %vm368, %v1047, 0
        %1052 = vmatprep.subr.mxu0 0.0
        %1053 = vmatpush1.xpose.msra.mxu0 %v1050
        %1054 = vmatprep.subr.mxu0 0.0
        %1055 = vmatpush1.xpose.msra.mxu0 0.0
        %1056 = vmatprep.subr.mxu0 0.0
        %1057 = vmatpush1.xpose.msra.mxu0 0.0
        %1058 = vmatprep.subr.mxu0 0.0
        %1059 = vmatpush1.xpose.msra.mxu0 0.0
        %1060 = vmatprep.subr.mxu0 0.0
        %1061 = vmatpush1.xpose.msra.mxu0 0.0
        %1062 = vmatprep.subr.mxu0 0.0
        %1063 = vmatpush1.xpose.msra.mxu0 0.0
        %1064 = vmatprep.subr.mxu0 0.0
        %1065 = vmatpush1.xpose.msra.mxu0 0.0
        %1066 = vmatprep.subr.mxu0 0.0
        %1067 = vmatpush1.xpose.msra.mxu0 0.0
        %1068 = vmatprep.subr.mxu0 0.0
        %1069 = vmatpush1.xpose.msra.mxu0 0.0
        %1070 = vmatprep.subr.mxu0 0.0
        %1071 = vmatpush1.xpose.msra.mxu0 0.0
        %1072 = vmatprep.subr.mxu0 0.0
        %1073 = vmatpush1.xpose.msra.mxu0 0.0
        %1074 = vmatprep.subr.mxu0 0.0
        %1075 = vmatpush1.xpose.msra.mxu0 0.0
        %1076 = vmatprep.subr.mxu0 0.0
        %1077 = vmatpush1.xpose.msra.mxu0 0.0
        %1078 = vmatprep.subr.mxu0 0.0
        %1079 = vmatpush1.xpose.msra.mxu0 0.0
        %1080 = vmatprep.subr.mxu0 0.0
        %1081 = vmatpush1.xpose.msra.mxu0 0.0
        %1082 = vmatprep.subr.mxu0 0.0
        %1083 = vmatpush1.xpose.msra.mxu0 0.0
        %1084 = vmatprep.subr.mxu0 0.0
        %1085 = vmatpush1.xpose.msra.mxu0 0.0
        %1086 = vmatprep.subr.mxu0 0.0
        %1087 = vmatpush1.xpose.msra.mxu0 0.0
        %1088 = vmatprep.subr.mxu0 0.0
        %1089 = vmatpush1.xpose.msra.mxu0 0.0
        %1090 = vmatprep.subr.mxu0 0.0
        %1091 = vmatpush1.xpose.msra.mxu0 0.0
        %1092 = vmatprep.subr.mxu0 0.0
        %1093 = vmatpush1.xpose.msra.mxu0 0.0
        %1094 = vmatprep.subr.mxu0 0.0
        %1095 = vmatpush1.xpose.msra.mxu0 0.0
        %1096 = vmatprep.subr.mxu0 0.0
        %1097 = vmatpush1.xpose.msra.mxu0 0.0
        %1098 = vmatprep.subr.mxu0 0.0
        %1099 = vmatpush1.xpose.msra.mxu0 0.0
        %1100 = vmatprep.subr.mxu0 0.0
        %1101 = vmatpush1.xpose.msra.mxu0 0.0
        %1102 = vmatprep.subr.mxu0 0.0
        %1103 = vmatpush1.xpose.msra.mxu0 0.0
        %1104 = vmatprep.subr.mxu0 0.0
        %1105 = vmatpush1.xpose.msra.mxu0 0.0
        %1106 = vmatprep.subr.mxu0 0.0
        %1107 = vmatpush1.xpose.msra.mxu0 0.0
        %1108 = vmatprep.subr.mxu0 0.0
        %1109 = vmatpush1.xpose.msra.mxu0 0.0
        %1110 = vmatprep.subr.mxu0 0.0
        %1111 = vmatpush1.xpose.msra.mxu0 0.0
        %1112 = vmatprep.subr.mxu0 0.0
        %1113 = vmatpush1.xpose.msra.mxu0 0.0
        %1114 = vmatprep.subr.mxu0 0.0
        %1115 = vmatpush1.xpose.msra.mxu0 0.0
        %1116 = vmatprep.mubr.f32.mxu0 0.0
        %1117 = vmatmul.mubr.f32.gmra.mrb[0].mxu0 %v1048
        %v1118 = vpop.f32.mrb[0].mxu0
        %v1119 = vadd.f32 %v364, %v1118
        %v1120 = vpop.f32.mrb[0].mxu0
        %1121 = vdwg.mxu0
        %v1122 = vsel %vm368, %v1119, -inf
        %1123 = vmax.xlane.f32.xlu0 %v1122
        %v1124 = vpop.xlane.xlu0 %1123
        %v1125 = vsub.f32 %v1119, %v1124
        %v1126 = vmul.f32 %v1125, 1.442695
        %v1127 = vpow.pop %v1126
        %v1128 = vsel %vm368, %v1127, 0.0
        %1129 = vadd.xlane.f32.xlu0 %v1128
        %v1130 = vpop.xlane.xlu0 %1129
        %v1131 = vrcp.pop %v1130
        %v1132 = vmul.f32 %v1127, %v1131
        %v1134 = vsel %vm368, %v1132, 0
        %1136 = vmatprep.subr.mxu0 0.0
        %1137 = vmatpush1.msra.mxu0 %v357
        %1138 = vmatprep.subr.mxu0 0.0
        %1139 = vmatpush1.msra.mxu0 0.0
        %1140 = vmatprep.subr.mxu0 0.0
        %1141 = vmatpush1.msra.mxu0 0.0
        %1142 = vmatprep.subr.mxu0 0.0
        %1143 = vmatpush1.msra.mxu0 0.0
        %1144 = vmatprep.subr.mxu0 0.0
        %1145 = vmatpush1.msra.mxu0 0.0
        %1146 = vmatprep.subr.mxu0 0.0
        %1147 = vmatpush1.msra.mxu0 0.0
        %1148 = vmatprep.subr.mxu0 0.0
        %1149 = vmatpush1.msra.mxu0 0.0
        %1150 = vmatprep.subr.mxu0 0.0
        %1151 = vmatpush1.msra.mxu0 0.0
        %1152 = vmatprep.subr.mxu0 0.0
        %1153 = vmatpush1.msra.mxu0 0.0
        %1154 = vmatprep.subr.mxu0 0.0
        %1155 = vmatpush1.msra.mxu0 0.0
        %1156 = vmatprep.subr.mxu0 0.0
        %1157 = vmatpush1.msra.mxu0 0.0
        %1158 = vmatprep.subr.mxu0 0.0
        %1159 = vmatpush1.msra.mxu0 0.0
        %1160 = vmatprep.subr.mxu0 0.0
        %1161 = vmatpush1.msra.mxu0 0.0
        %1162 = vmatprep.subr.mxu0 0.0
        %1163 = vmatpush1.msra.mxu0 0.0
        %1164 = vmatprep.subr.mxu0 0.0
        %1165 = vmatpush1.msra.mxu0 0.0
        %1166 = vmatprep.subr.mxu0 0.0
        %1167 = vmatpush1.msra.mxu0 0.0
        %1168 = vmatprep.subr.mxu0 0.0
        %1169 = vmatpush1.msra.mxu0 0.0
        %1170 = vmatprep.subr.mxu0 0.0
        %1171 = vmatpush1.msra.mxu0 0.0
        %1172 = vmatprep.subr.mxu0 0.0
        %1173 = vmatpush1.msra.mxu0 0.0
        %1174 = vmatprep.subr.mxu0 0.0
        %1175 = vmatpush1.msra.mxu0 0.0
        %1176 = vmatprep.subr.mxu0 0.0
        %1177 = vmatpush1.msra.mxu0 0.0
        %1178 = vmatprep.subr.mxu0 0.0
        %1179 = vmatpush1.msra.mxu0 0.0
        %1180 = vmatprep.subr.mxu0 0.0
        %1181 = vmatpush1.msra.mxu0 0.0
        %1182 = vmatprep.subr.mxu0 0.0
        %1183 = vmatpush1.msra.mxu0 0.0
        %1184 = vmatprep.subr.mxu0 0.0
        %1185 = vmatpush1.msra.mxu0 0.0
        %1186 = vmatprep.subr.mxu0 0.0
        %1187 = vmatpush1.msra.mxu0 0.0
        %1188 = vmatprep.subr.mxu0 0.0
        %1189 = vmatpush1.msra.mxu0 0.0
        %1190 = vmatprep.subr.mxu0 0.0
        %1191 = vmatpush1.msra.mxu0 0.0
        %1192 = vmatprep.subr.mxu0 0.0
        %1193 = vmatpush1.msra.mxu0 0.0
        %1194 = vmatprep.subr.mxu0 0.0
        %1195 = vmatpush1.msra.mxu0 0.0
        %1196 = vmatprep.subr.mxu0 0.0
        %1197 = vmatpush1.msra.mxu0 0.0
        %1198 = vmatprep.subr.mxu0 0.0
        %1199 = vmatpush1.msra.mxu0 0.0
        %1200 = vmatprep.mubr.f32.mxu0 0.0
        %1201 = vmatmul.mubr.f32.gmra.mrb[0].mxu0 %v1134
        %v1202 = vpop.f32.mrb[0].mxu0
        %v1203 = vadd.f32 0.0, %v1202
        %v1204 = vpop.f32.mrb[0].mxu0
        %1205 = vdwg.mxu0
        %1207 = vrot.lane.b32.xlu0 %v1203, 32
        %v1208 = vpop.permute.xlu0 %1207
        %vm1210 = vcmask 326912
        %1211 = vst.msk [vmem:[#allocation2] sm:$0xff] %vm1210, %v1208
        %1212 = vrot.lane.b32.xlu0 %v355, 88
        %v1213 = vpop.permute.xlu0 %1212
        %1214 = vrot.lane.b32.xlu0 %v355, 40
        %v1215 = vpop.permute.xlu0 %1214
        %v1216 = vsel %vm368, %v1213, 0
        %v1218 = vsel %vm368, %v1215, 0
        %1220 = vmatprep.subr.mxu0 0.0
        %1221 = vmatpush1.xpose.msra.mxu0 %v1218
        %1222 = vmatprep.subr.mxu0 0.0
        %1223 = vmatpush1.xpose.msra.mxu0 0.0
        %1224 = vmatprep.subr.mxu0 0.0
        %1225 = vmatpush1.xpose.msra.mxu0 0.0
        %1226 = vmatprep.subr.mxu0 0.0
        %1227 = vmatpush1.xpose.msra.mxu0 0.0
        %1228 = vmatprep.subr.mxu0 0.0
        %1229 = vmatpush1.xpose.msra.mxu0 0.0
        %1230 = vmatprep.subr.mxu0 0.0
        %1231 = vmatpush1.xpose.msra.mxu0 0.0
        %1232 = vmatprep.subr.mxu0 0.0
        %1233 = vmatpush1.xpose.msra.mxu0 0.0
        %1234 = vmatprep.subr.mxu0 0.0
        %1235 = vmatpush1.xpose.msra.mxu0 0.0
        %1236 = vmatprep.subr.mxu0 0.0
        %1237 = vmatpush1.xpose.msra.mxu0 0.0
        %1238 = vmatprep.subr.mxu0 0.0
        %1239 = vmatpush1.xpose.msra.mxu0 0.0
        %1240 = vmatprep.subr.mxu0 0.0
        %1241 = vmatpush1.xpose.msra.mxu0 0.0
        %1242 = vmatprep.subr.mxu0 0.0
        %1243 = vmatpush1.xpose.msra.mxu0 0.0
        %1244 = vmatprep.subr.mxu0 0.0
        %1245 = vmatpush1.xpose.msra.mxu0 0.0
        %1246 = vmatprep.subr.mxu0 0.0
        %1247 = vmatpush1.xpose.msra.mxu0 0.0
        %1248 = vmatprep.subr.mxu0 0.0
        %1249 = vmatpush1.xpose.msra.mxu0 0.0
        %1250 = vmatprep.subr.mxu0 0.0
        %1251 = vmatpush1.xpose.msra.mxu0 0.0
        %1252 = vmatprep.subr.mxu0 0.0
        %1253 = vmatpush1.xpose.msra.mxu0 0.0
        %1254 = vmatprep.subr.mxu0 0.0
        %1255 = vmatpush1.xpose.msra.mxu0 0.0
        %1256 = vmatprep.subr.mxu0 0.0
        %1257 = vmatpush1.xpose.msra.mxu0 0.0
        %1258 = vmatprep.subr.mxu0 0.0
        %1259 = vmatpush1.xpose.msra.mxu0 0.0
        %1260 = vmatprep.subr.mxu0 0.0
        %1261 = vmatpush1.xpose.msra.mxu0 0.0
        %1262 = vmatprep.subr.mxu0 0.0
        %1263 = vmatpush1.xpose.msra.mxu0 0.0
        %1264 = vmatprep.subr.mxu0 0.0
        %1265 = vmatpush1.xpose.msra.mxu0 0.0
        %1266 = vmatprep.subr.mxu0 0.0
        %1267 = vmatpush1.xpose.msra.mxu0 0.0
        %1268 = vmatprep.subr.mxu0 0.0
        %1269 = vmatpush1.xpose.msra.mxu0 0.0
        %1270 = vmatprep.subr.mxu0 0.0
        %1271 = vmatpush1.xpose.msra.mxu0 0.0
        %1272 = vmatprep.subr.mxu0 0.0
        %1273 = vmatpush1.xpose.msra.mxu0 0.0
        %1274 = vmatprep.subr.mxu0 0.0
        %1275 = vmatpush1.xpose.msra.mxu0 0.0
        %1276 = vmatprep.subr.mxu0 0.0
        %1277 = vmatpush1.xpose.msra.mxu0 0.0
        %1278 = vmatprep.subr.mxu0 0.0
        %1279 = vmatpush1.xpose.msra.mxu0 0.0
        %1280 = vmatprep.subr.mxu0 0.0
        %1281 = vmatpush1.xpose.msra.mxu0 0.0
        %1282 = vmatprep.subr.mxu0 0.0
        %1283 = vmatpush1.xpose.msra.mxu0 0.0
        %1284 = vmatprep.mubr.f32.mxu0 0.0
        %1285 = vmatmul.mubr.f32.gmra.mrb[0].mxu0 %v1216
        %v1286 = vpop.f32.mrb[0].mxu0
        %v1287 = vadd.f32 %v364, %v1286
        %v1288 = vpop.f32.mrb[0].mxu0
        %1289 = vdwg.mxu0
        %v1290 = vsel %vm368, %v1287, -inf
        %1291 = vmax.xlane.f32.xlu0 %v1290
        %v1292 = vpop.xlane.xlu0 %1291
        %v1293 = vsub.f32 %v1287, %v1292
        %v1294 = vmul.f32 %v1293, 1.442695
        %v1295 = vpow.pop %v1294
        %v1296 = vsel %vm368, %v1295, 0.0
        %1297 = vadd.xlane.f32.xlu0 %v1296
        %v1298 = vpop.xlane.xlu0 %1297
        %v1299 = vrcp.pop %v1298
        %v1300 = vmul.f32 %v1295, %v1299
        %1302 = vrot.lane.b32.xlu0 %v357, 120
        %v1303 = vpop.permute.xlu0 %1302
        %v1306 = vsel %vm368, %v1300, 0
        %1308 = vmatprep.subr.mxu0 0.0
        %1309 = vmatpush1.msra.mxu0 %v1303
        %1310 = vmatprep.subr.mxu0 0.0
        %1311 = vmatpush1.msra.mxu0 0.0
        %1312 = vmatprep.subr.mxu0 0.0
        %1313 = vmatpush1.msra.mxu0 0.0
        %1314 = vmatprep.subr.mxu0 0.0
        %1315 = vmatpush1.msra.mxu0 0.0
        %1316 = vmatprep.subr.mxu0 0.0
        %1317 = vmatpush1.msra.mxu0 0.0
        %1318 = vmatprep.subr.mxu0 0.0
        %1319 = vmatpush1.msra.mxu0 0.0
        %1320 = vmatprep.subr.mxu0 0.0
        %1321 = vmatpush1.msra.mxu0 0.0
        %1322 = vmatprep.subr.mxu0 0.0
        %1323 = vmatpush1.msra.mxu0 0.0
        %1324 = vmatprep.subr.mxu0 0.0
        %1325 = vmatpush1.msra.mxu0 0.0
        %1326 = vmatprep.subr.mxu0 0.0
        %1327 = vmatpush1.msra.mxu0 0.0
        %1328 = vmatprep.subr.mxu0 0.0
        %1329 = vmatpush1.msra.mxu0 0.0
        %1330 = vmatprep.subr.mxu0 0.0
        %1331 = vmatpush1.msra.mxu0 0.0
        %1332 = vmatprep.subr.mxu0 0.0
        %1333 = vmatpush1.msra.mxu0 0.0
        %1334 = vmatprep.subr.mxu0 0.0
        %1335 = vmatpush1.msra.mxu0 0.0
        %1336 = vmatprep.subr.mxu0 0.0
        %1337 = vmatpush1.msra.mxu0 0.0
        %1338 = vmatprep.subr.mxu0 0.0
        %1339 = vmatpush1.msra.mxu0 0.0
        %1340 = vmatprep.subr.mxu0 0.0
        %1341 = vmatpush1.msra.mxu0 0.0
        %1342 = vmatprep.subr.mxu0 0.0
        %1343 = vmatpush1.msra.mxu0 0.0
        %1344 = vmatprep.subr.mxu0 0.0
        %1345 = vmatpush1.msra.mxu0 0.0
        %1346 = vmatprep.subr.mxu0 0.0
        %1347 = vmatpush1.msra.mxu0 0.0
        %1348 = vmatprep.subr.mxu0 0.0
        %1349 = vmatpush1.msra.mxu0 0.0
        %1350 = vmatprep.subr.mxu0 0.0
        %1351 = vmatpush1.msra.mxu0 0.0
        %1352 = vmatprep.subr.mxu0 0.0
        %1353 = vmatpush1.msra.mxu0 0.0
        %1354 = vmatprep.subr.mxu0 0.0
        %1355 = vmatpush1.msra.mxu0 0.0
        %1356 = vmatprep.subr.mxu0 0.0
        %1357 = vmatpush1.msra.mxu0 0.0
        %1358 = vmatprep.subr.mxu0 0.0
        %1359 = vmatpush1.msra.mxu0 0.0
        %1360 = vmatprep.subr.mxu0 0.0
        %1361 = vmatpush1.msra.mxu0 0.0
        %1362 = vmatprep.subr.mxu0 0.0
        %1363 = vmatpush1.msra.mxu0 0.0
        %1364 = vmatprep.subr.mxu0 0.0
        %1365 = vmatpush1.msra.mxu0 0.0
        %1366 = vmatprep.subr.mxu0 0.0
        %1367 = vmatpush1.msra.mxu0 0.0
        %1368 = vmatprep.subr.mxu0 0.0
        %1369 = vmatpush1.msra.mxu0 0.0
        %1370 = vmatprep.subr.mxu0 0.0
        %1371 = vmatpush1.msra.mxu0 0.0
        %1372 = vmatprep.mubr.f32.mxu0 0.0
        %1373 = vmatmul.mubr.f32.gmra.mrb[0].mxu0 %v1306
        %v1374 = vpop.f32.mrb[0].mxu0
        %v1375 = vadd.f32 0.0, %v1374
        %v1376 = vpop.f32.mrb[0].mxu0
        %1377 = vdwg.mxu0
        %1379 = vrot.lane.b32.xlu0 %v1375, 40
        %v1380 = vpop.permute.xlu0 %1379
        %vm1382 = vcmask 392512
        %1383 = vst.msk [vmem:[#allocation2] sm:$0xff] %vm1382, %v1380
        %v1384 = vld [vmem:[#allocation2] sm:$0xff]
        %v1385 = vld [vmem:[%s3] sm:$0xff]
        %v1386 = vld [vmem:[%s3 + $0x8] sm:$0xff]
        %v1387 = vld [vmem:[%s3 + $0x10] sm:$0xff]
        %v1388 = vld [vmem:[%s3 + $0x18] sm:$0xff]
        %v1389 = vld [vmem:[%s3 + $0x20] sm:$0xff]
        %v1390 = vld [vmem:[%s3 + $0x28] sm:$0xff]
        %v1392 = vsel %vm256, %v1384, 0
        %1394 = vmatprep.subr.mxu0 0.0
        %1395 = vmatpush1.msra.mxu0 %v1385
        %1396 = vmatprep.subr.mxu0 0.0
        %1397 = vmatpush1.msra.mxu0 %v1386
        %1398 = vmatprep.subr.mxu0 0.0
        %1399 = vmatpush1.msra.mxu0 %v1387
        %1400 = vmatprep.subr.mxu0 0.0
        %1401 = vmatpush1.msra.mxu0 %v1388
        %1402 = vmatprep.subr.mxu0 0.0
        %1403 = vmatpush1.msra.mxu0 %v1389
        %1404 = vmatprep.subr.mxu0 0.0
        %1405 = vmatpush1.msra.mxu0 %v1390
        %1406 = vmatprep.subr.mxu0 0.0
        %1407 = vmatpush1.msra.mxu0 0.0
        %1408 = vmatprep.subr.mxu0 0.0
        %1409 = vmatpush1.msra.mxu0 0.0
        %1410 = vmatprep.subr.mxu0 0.0
        %1411 = vmatpush1.msra.mxu0 0.0
        %1412 = vmatprep.subr.mxu0 0.0
        %1413 = vmatpush1.msra.mxu0 0.0
        %1414 = vmatprep.subr.mxu0 0.0
        %1415 = vmatpush1.msra.mxu0 0.0
        %1416 = vmatprep.subr.mxu0 0.0
        %1417 = vmatpush1.msra.mxu0 0.0
        %1418 = vmatprep.subr.mxu0 0.0
        %1419 = vmatpush1.msra.mxu0 0.0
        %1420 = vmatprep.subr.mxu0 0.0
        %1421 = vmatpush1.msra.mxu0 0.0
        %1422 = vmatprep.subr.mxu0 0.0
        %1423 = vmatpush1.msra.mxu0 0.0
        %1424 = vmatprep.subr.mxu0 0.0
        %1425 = vmatpush1.msra.mxu0 0.0
        %1426 = vmatprep.subr.mxu0 0.0
        %1427 = vmatpush1.msra.mxu0 0.0
        %1428 = vmatprep.subr.mxu0 0.0
        %1429 = vmatpush1.msra.mxu0 0.0
        %1430 = vmatprep.subr.mxu0 0.0
        %1431 = vmatpush1.msra.mxu0 0.0
        %1432 = vmatprep.subr.mxu0 0.0
        %1433 = vmatpush1.msra.mxu0 0.0
        %1434 = vmatprep.subr.mxu0 0.0
        %1435 = vmatpush1.msra.mxu0 0.0
        %1436 = vmatprep.subr.mxu0 0.0
        %1437 = vmatpush1.msra.mxu0 0.0
        %1438 = vmatprep.subr.mxu0 0.0
        %1439 = vmatpush1.msra.mxu0 0.0
        %1440 = vmatprep.subr.mxu0 0.0
        %1441 = vmatpush1.msra.mxu0 0.0
        %1442 = vmatprep.subr.mxu0 0.0
        %1443 = vmatpush1.msra.mxu0 0.0
        %1444 = vmatprep.subr.mxu0 0.0
        %1445 = vmatpush1.msra.mxu0 0.0
        %1446 = vmatprep.subr.mxu0 0.0
        %1447 = vmatpush1.msra.mxu0 0.0
        %1448 = vmatprep.subr.mxu0 0.0
        %1449 = vmatpush1.msra.mxu0 0.0
        %1450 = vmatprep.subr.mxu0 0.0
        %1451 = vmatpush1.msra.mxu0 0.0
        %1452 = vmatprep.subr.mxu0 0.0
        %1453 = vmatpush1.msra.mxu0 0.0
        %1454 = vmatprep.subr.mxu0 0.0
        %1455 = vmatpush1.msra.mxu0 0.0
        %1456 = vmatprep.subr.mxu0 0.0
        %1457 = vmatpush1.msra.mxu0 0.0
        %1458 = vmatprep.mubr.f32.mxu0 0.0
        %1459 = vmatmul.mubr.f32.gmra.mrb[0].mxu0 %v1392
        %v1460 = vpop.f32.mrb[0].mxu0
        %v1461 = vadd.f32 %v252, %v1460
        %v1462 = vpop.f32.mrb[0].mxu0
        %1463 = vdwg.mxu0
        %v1464 = vadd.f32 %v247, %v1461
        %v1465 = vsel %vm256, %v1464, 0.0
        %1466 = vadd.xlane.f32.xlu0 %v1465
        %v1467 = vpop.xlane.xlu0 %1466
        %v1468 = vmul.f32 %v1467, %v260
        %v1469 = vsub.f32 %v1464, %v1468
        %v1470 = vmul.f32 %v1469, %v1469
        %v1471 = vsel %vm256, %v1470, 0.0
        %1472 = vadd.xlane.f32.xlu0 %v1471
        %v1473 = vpop.xlane.xlu0 %1472
        %v1474 = vmul.f32 %v1473, %v260
        %v1475 = vadd.f32 %v1474, 1e-05
        %v1476 = vrsqrt.pop %v1475
        %v1477 = vmul.f32 %v1469, %v1476
        %v1478 = vmul.f32 %v1477, %v250
        %v1479 = vadd.f32 %v1478, %v251
        %v1480 = vld [vmem:[%s4] sm:$0xff]
        %v1481 = vld [vmem:[%s4 + $0x8] sm:$0xff]
        %v1482 = vld [vmem:[%s4 + $0x10] sm:$0xff]
        %v1483 = vld [vmem:[%s4 + $0x18] sm:$0xff]
        %v1484 = vld [vmem:[%s4 + $0x20] sm:$0xff]
        %v1485 = vld [vmem:[%s4 + $0x28] sm:$0xff]
        %v1486 = vld [vmem:[%s4 + $0x30] sm:$0xff]
        %v1487 = vld [vmem:[%s4 + $0x38] sm:$0xff]
        %v1488 = vld [vmem:[%s4 + $0x40] sm:$0xff]
        %v1489 = vld [vmem:[%s4 + $0x48] sm:$0xff]
        %v1490 = vld [vmem:[%s4 + $0x50] sm:$0xff]
        %v1491 = vld [vmem:[%s4 + $0x58] sm:$0xff]
        %v1493 = vlaneseq
        %v1494 = vshrl.u32 %v1493, 7
        %v1495 = vsub.s32 0, %v1494
        %v1496 = vrot.slane %v254, %v1495
        %v1497 = vlaneseq
        %v1498 = vshrl.u32 %v1497, 7
        %v1499 = vsub.s32 1, %v1498
        %v1500 = vrot.slane %v254, %v1499
        %v1504 = vsel %vm256, %v1479, 0
        %1506 = vmatprep.subr.mxu0 %v1481
        %1507 = vmatpush1.msra.mxu0 %v1480
        %1508 = vmatprep.subr.mxu0 %v1483
        %1509 = vmatpush1.msra.mxu0 %v1482
        %1510 = vmatprep.subr.mxu0 %v1485
        %1511 = vmatpush1.msra.mxu0 %v1484
        %1512 = vmatprep.subr.mxu0 %v1487
        %1513 = vmatpush1.msra.mxu0 %v1486
        %1514 = vmatprep.subr.mxu0 %v1489
        %1515 = vmatpush1.msra.mxu0 %v1488
        %1516 = vmatprep.subr.mxu0 %v1491
        %1517 = vmatpush1.msra.mxu0 %v1490
        %1518 = vmatprep.subr.mxu0 0.0
        %1519 = vmatpush1.msra.mxu0 0.0
        %1520 = vmatprep.subr.mxu0 0.0
        %1521 = vmatpush1.msra.mxu0 0.0
        %1522 = vmatprep.subr.mxu0 0.0
        %1523 = vmatpush1.msra.mxu0 0.0
        %1524 = vmatprep.subr.mxu0 0.0
        %1525 = vmatpush1.msra.mxu0 0.0
        %1526 = vmatprep.subr.mxu0 0.0
        %1527 = vmatpush1.msra.mxu0 0.0
        %1528 = vmatprep.subr.mxu0 0.0
        %1529 = vmatpush1.msra.mxu0 0.0
        %1530 = vmatprep.subr.mxu0 0.0
        %1531 = vmatpush1.msra.mxu0 0.0
        %1532 = vmatprep.subr.mxu0 0.0
        %1533 = vmatpush1.msra.mxu0 0.0
        %1534 = vmatprep.subr.mxu0 0.0
        %1535 = vmatpush1.msra.mxu0 0.0
        %1536 = vmatprep.subr.mxu0 0.0
        %1537 = vmatpush1.msra.mxu0 0.0
        %1538 = vmatprep.subr.mxu0 0.0
        %1539 = vmatpush1.msra.mxu0 0.0
        %1540 = vmatprep.subr.mxu0 0.0
        %1541 = vmatpush1.msra.mxu0 0.0
        %1542 = vmatprep.subr.mxu0 0.0
        %1543 = vmatpush1.msra.mxu0 0.0
        %1544 = vmatprep.subr.mxu0 0.0
        %1545 = vmatpush1.msra.mxu0 0.0
        %1546 = vmatprep.subr.mxu0 0.0
        %1547 = vmatpush1.msra.mxu0 0.0
        %1548 = vmatprep.subr.mxu0 0.0
        %1549 = vmatpush1.msra.mxu0 0.0
        %1550 = vmatprep.subr.mxu0 0.0
        %1551 = vmatpush1.msra.mxu0 0.0
        %1552 = vmatprep.subr.mxu0 0.0
        %1553 = vmatpush1.msra.mxu0 0.0
        %1554 = vmatprep.subr.mxu0 0.0
        %1555 = vmatpush1.msra.mxu0 0.0
        %1556 = vmatprep.subr.mxu0 0.0
        %1557 = vmatpush1.msra.mxu0 0.0
        %1558 = vmatprep.subr.mxu0 0.0
        %1559 = vmatpush1.msra.mxu0 0.0
        %1560 = vmatprep.subr.mxu0 0.0
        %1561 = vmatpush1.msra.mxu0 0.0
        %1562 = vmatprep.subr.mxu0 0.0
        %1563 = vmatpush1.msra.mxu0 0.0
        %1564 = vmatprep.subr.mxu0 0.0
        %1565 = vmatpush1.msra.mxu0 0.0
        %1566 = vmatprep.subr.mxu0 0.0
        %1567 = vmatpush1.msra.mxu0 0.0
        %1568 = vmatprep.subr.mxu0 0.0
        %1569 = vmatpush1.msra.mxu0 0.0
        %1570 = vmatprep.mubr.f32.mxu0 0.0
        %1571 = vmatmul.mubr.f32.gmra.mrb[0].mxu0 %v1504
        %v1572 = vpop.f32.mrb[0].mxu0
        %v1573 = vadd.f32 %v1496, %v1572
        %v1574 = vpop.f32.mrb[0].mxu0
        %v1575 = vadd.f32 %v1500, %v1574
        %1576 = vdwg.mxu0
        %v1577 = vmax.f32 %v1573, 0.0
        %v1578 = vmax.f32 %v1575, 0.0
        %v1579 = vld [vmem:[%s5] sm:$0xff]
        %v1580 = vld [vmem:[%s5 + $0x8] sm:$0xff]
        %v1581 = vld [vmem:[%s5 + $0x10] sm:$0xff]
        %v1582 = vld [vmem:[%s5 + $0x18] sm:$0xff]
        %v1583 = vld [vmem:[%s5 + $0x20] sm:$0xff]
        %v1584 = vld [vmem:[%s5 + $0x28] sm:$0xff]
        %v1585 = vld [vmem:[%s5 + $0x30] sm:$0xff]
        %v1586 = vld [vmem:[%s5 + $0x38] sm:$0xff]
        %v1587 = vld [vmem:[%s5 + $0x40] sm:$0xff]
        %v1588 = vld [vmem:[%s5 + $0x48] sm:$0xff]
        %v1589 = vld [vmem:[%s5 + $0x50] sm:$0xff]
        %v1590 = vld [vmem:[%s5 + $0x58] sm:$0xff]
        %v1591 = vld [vmem:[%s5 + $0x60] sm:$0xff]
        %v1592 = vld [vmem:[%s5 + $0x68] sm:$0xff]
        %v1593 = vld [vmem:[%s5 + $0x70] sm:$0xff]
        %v1594 = vld [vmem:[%s5 + $0x78] sm:$0xff]
        %v1595 = vld [vmem:[%s5 + $0x80] sm:$0xff]
        %v1596 = vld [vmem:[%s5 + $0x88] sm:$0xff]
        %v1597 = vld [vmem:[%s5 + $0x90] sm:$0xff]
        %v1598 = vld [vmem:[%s5 + $0x98] sm:$0xff]
        %v1599 = vld [vmem:[%s5 + $0xa0] sm:$0xff]
        %v1600 = vld [vmem:[%s5 + $0xa8] sm:$0xff]
        %v1601 = vld [vmem:[%s5 + $0xb0] sm:$0xff]
        %v1602 = vld [vmem:[%s5 + $0xb8] sm:$0xff]
        %vm1603 = vcmask 523264
        %v1605 = vsel %vm1603, %v1578, 0
        %1607 = vmatprep.subr.mxu0 0.0
        %1608 = vmatpush1.msra.mxu0 %v1579
        %1609 = vmatprep.subr.mxu0 0.0
        %1610 = vmatpush1.msra.mxu0 %v1580
        %1611 = vmatprep.subr.mxu0 0.0
        %1612 = vmatpush1.msra.mxu0 %v1581
        %1613 = vmatprep.subr.mxu0 0.0
        %1614 = vmatpush1.msra.mxu0 %v1582
        %1615 = vmatprep.subr.mxu0 0.0
        %1616 = vmatpush1.msra.mxu0 %v1583
        %1617 = vmatprep.subr.mxu0 0.0
        %1618 = vmatpush1.msra.mxu0 %v1584
        %1619 = vmatprep.subr.mxu0 0.0
        %1620 = vmatpush1.msra.mxu0 %v1585
        %1621 = vmatprep.subr.mxu0 0.0
        %1622 = vmatpush1.msra.mxu0 %v1586
        %1623 = vmatprep.subr.mxu0 0.0
        %1624 = vmatpush1.msra.mxu0 %v1587
        %1625 = vmatprep.subr.mxu0 0.0
        %1626 = vmatpush1.msra.mxu0 %v1588
        %1627 = vmatprep.subr.mxu0 0.0
        %1628 = vmatpush1.msra.mxu0 %v1589
        %1629 = vmatprep.subr.mxu0 0.0
        %1630 = vmatpush1.msra.mxu0 %v1590
        %1631 = vmatprep.subr.mxu0 0.0
        %1632 = vmatpush1.msra.mxu0 %v1591
        %1633 = vmatprep.subr.mxu0 0.0
        %1634 = vmatpush1.msra.mxu0 %v1592
        %1635 = vmatprep.subr.mxu0 0.0
        %1636 = vmatpush1.msra.mxu0 %v1593
        %1637 = vmatprep.subr.mxu0 0.0
        %1638 = vmatpush1.msra.mxu0 %v1594
        %1639 = vmatprep.subr.mxu0 0.0
        %1640 = vmatpush1.msra.mxu0 %v1595
        %1641 = vmatprep.subr.mxu0 0.0
        %1642 = vmatpush1.msra.mxu0 %v1596
        %1643 = vmatprep.subr.mxu0 0.0
        %1644 = vmatpush1.msra.mxu0 %v1597
        %1645 = vmatprep.subr.mxu0 0.0
        %1646 = vmatpush1.msra.mxu0 %v1598
        %1647 = vmatprep.subr.mxu0 0.0
        %1648 = vmatpush1.msra.mxu0 %v1599
        %1649 = vmatprep.subr.mxu0 0.0
        %1650 = vmatpush1.msra.mxu0 %v1600
        %1651 = vmatprep.subr.mxu0 0.0
        %1652 = vmatpush1.msra.mxu0 %v1601
        %1653 = vmatprep.subr.mxu0 0.0
        %1654 = vmatpush1.msra.mxu0 %v1602
        %1655 = vmatprep.subr.mxu0 0.0
        %1656 = vmatpush1.msra.mxu0 0.0
        %1657 = vmatprep.subr.mxu0 0.0
        %1658 = vmatpush1.msra.mxu0 0.0
        %1659 = vmatprep.subr.mxu0 0.0
        %1660 = vmatpush1.msra.mxu0 0.0
        %1661 = vmatprep.subr.mxu0 0.0
        %1662 = vmatpush1.msra.mxu0 0.0
        %1663 = vmatprep.subr.mxu0 0.0
        %1664 = vmatpush1.msra.mxu0 0.0
        %1665 = vmatprep.subr.mxu0 0.0
        %1666 = vmatpush1.msra.mxu0 0.0
        %1667 = vmatprep.subr.mxu0 0.0
        %1668 = vmatpush1.msra.mxu0 0.0
        %1669 = vmatprep.subr.mxu0 0.0
        %1670 = vmatpush1.msra.mxu0 0.0
        %1671 = vmatprep.mubr.f32.mxu0 %v1605
        %1672 = vmatmul.mubr.f32.gmra.mrb[0].mxu0 %v1577
        %v1673 = vpop.f32.mrb[0].mxu0
        %v1674 = vadd.f32 %v255, %v1673
        %v1675 = vpop.f32.mrb[0].mxu0
        %1676 = vdwg.mxu0
        %v1677 = vadd.f32 %v1464, %v1674
        %1678 = vst.msk [vmem:[%s242] sm:$0xff] %vm256, %v1677
        %s1679 = sand.u32 %s159, 1
        %s1680 = scalar_lea.sflag [#allocation4], %s1679
        %s1681 = sand.u32 %s159, 1
        %s1682 = smul.addr %s1681, 8
        %s1683 = scalar_lea.vmem [#allocation3], %s1682
        // Predicated region
        $region45: #{tpu_custom_call.1} parent=43 // pred_check
          %p1684 = pneg %p169
        $region46: #{tpu_custom_call.1} parent=43 // pred_check_branch
          %1686 = sbr.rel (%p1684) target = $region48
        $region47: #{tpu_custom_call.1} parent=43 // pred_region
          %s1688 = ssub.s32 128, 128
          %1689 = vsyncadd %s1680, %s1688
          %s1690 = smul.addr %s20, 128
          %s1691 = scalar_lea.hbm %s6, %s1690
          %s1693 = sshll.u32 %s1683, 4
          %s1694 = int_to_ptr.vmem [resolvable:$true] %s1693
          %1696 = dma.vmem_to_hbm [thread:$0]  %s1694, 128, %s1691, %s1680
        $region48: #{tpu_custom_call.1} parent=43 // pred_fallthru
          _
      $region44: #{tpu_custom_call.1} parent=5 // pred_fallthru
        _
      %p1697 = scmp.le.s32.totalorder 2, %s15
      // Predicated region
      $region49: #{tpu_custom_call.1} parent=5 // pred_check
        %p1698 = pneg %p1697
      $region50: #{tpu_custom_call.1} parent=5 // pred_check_branch
        %1700 = sbr.rel (%p1698) target = $region52
      $region51: #{tpu_custom_call.1} parent=5 // pred_region
        %s1701 = ssub.s32 %s15, 2
        // Predicated region
        $region53: #{tpu_custom_call.1} parent=51 // pred_check
          %p1702 = pneg %p175
        $region54: #{tpu_custom_call.1} parent=51 // pred_check_branch
          %1704 = sbr.rel (%p1702) target = $region56
        $region55: #{tpu_custom_call.1} parent=51 // pred_region
          %s1705 = sand.u32 %s160, 1
          %s1706 = scalar_lea.sflag [#allocation4], %s1705
          %s1707 = sand.u32 %s160, 1
          %s1708 = smul.addr %s1707, 8
          %s1709 = scalar_lea.vmem [#allocation3], %s1708
          %1710 = dma.done %s1706, 128
        $region56: #{tpu_custom_call.1} parent=51 // pred_fallthru
          _
      $region52: #{tpu_custom_call.1} parent=5 // pred_fallthru
        _
    $region6: #{tpu_custom_call.1} parent=1 // loop_footer
      %s19 = sadd.s32 1, %s15
    $region7: #{tpu_custom_call.1} parent=1 // loop_footer_branch
      %14 = sbr.rel target = $region3
    $region8: #{tpu_custom_call.1} parent=1 // loop_exit
      _
    %1711 = vsyncpa [#allocation4], 1
    %s1712 = scalar_lea.sflag [#allocation4], 1
    %1713 = vsyncpa %s1712, 1

</llo_original>
